<compile_context>
chip_gen: v7x
topology: tpu7x:2x2x1
jax: 0.10.0
libtpu: 0.0.40
codegen_flags: <defaults>
</compile_context>

<pallas_src>
import math

import jax
import jax.numpy as jnp
from jax import lax
from jax.experimental import pallas as pl
from jax.experimental.pallas import tpu as pltpu

NUM_POINTS = 100                              # matches the PyTorch reference
NPAD = 128                                    # lane-padded point count (pads duplicate pt 99)
BLK = 8                                       # ellipse-1 rows processed per loop step
_STEP = 2.0 * math.pi / (NUM_POINTS - 1)      # torch.linspace includes the endpoint

# 8-row blocks covering indices 0..99.  The last block starts at 92 so it
# overlaps block 11 instead of running past index 99: duplicated rows cannot
# change max-over-i or min-over-i, so no masking is needed anywhere.
_BLOCK_STARTS = [8 * b for b in range(12)] + [NUM_POINTS - BLK]   # [0, 8, ..., 88, 92]


def _hausdorff_kernel(e1_ref, e2_ref, out_ref):
    """Symmetric Hausdorff distance for ellipse pair `pl.program_id(0)`.

    e1_ref / e2_ref: (B, 5) float32 in SMEM = [x, y, semi_major, semi_minor, rot].
    out_ref: (1, 1, 1) float32 VMEM block for this pair.
    """
    p = pl.program_id(0)

    x1, y1, a1, b1 = e1_ref[p, 0], e1_ref[p, 1], e1_ref[p, 2], e1_ref[p, 3]
    x2, y2, a2, b2 = e2_ref[p, 0], e2_ref[p, 1], e2_ref[p, 2], e2_ref[p, 3]

    # ---- runtime transcendentals (8 EUP pushes total) ------------------------
    r1 = jnp.full((1, 1), e1_ref[p, 4], dtype=jnp.float32)
    r2 = jnp.full((1, 1), e2_ref[p, 4], dtype=jnp.float32)
    cr1, sr1 = jnp.cos(r1), jnp.sin(r1)
    cr2, sr2 = jnp.cos(r2), jnp.sin(r2)

    # Ellipse-2 points, lane-oriented (1, NPAD).  Lanes >= 100 replicate point 99.
    lane = jnp.minimum(
        lax.broadcasted_iota(jnp.int32, (1, NPAD), 1), NUM_POINTS - 1)
    th_row = lane.astype(jnp.float32) * _STEP
    cos_row = jnp.cos(th_row)                 # 1 lane-dense EUP push
    sin_row = jnp.sin(th_row)                 # 1 lane-dense EUP push
    p2x = (cr2 * a2) * cos_row - (sr2 * b2) * sin_row + x2        # (1, NPAD)
    p2y = (sr2 * a2) * cos_row + (cr2 * b2) * sin_row + y2
    # Hoisted sublane broadcasts (JAX does not CSE broadcast_in_dim inside loops).
    p2x8 = jnp.broadcast_to(p2x, (BLK, NPAD))                     # (8, NPAD)
    p2y8 = jnp.broadcast_to(p2y, (BLK, NPAD))

    # Ellipse-1 base angles for one 8-row block (sublane-oriented).  Each loop
    # step rotates this base by a compile-time-constant block offset (VPU only),
    # instead of 2 more EUP pushes per block or a transpose.
    th_base = lax.broadcasted_iota(jnp.int32, (BLK, 1), 0).astype(jnp.float32) * _STEP
    cos_base = jnp.cos(th_base)               # (BLK, 1)
    sin_base = jnp.sin(th_base)

    # Rotation + axis scale folded into four (1,1) splats.
    ka = cr1 * a1
    kb = sr1 * b1
    kc = sr1 * a1
    kd = cr1 * b1

    # ---- streamed pairwise squared distances ---------------------------------
    # One (8,128) tile per step; never materializes the full (128,128) matrix.
    col_min = None        # (BLK, NPAD): running min over ellipse-1 points (for p2->p1)
    row_maxmin = None     # (BLK, 1):    running max of per-row lane-mins   (for p1->p2)
    for start in _BLOCK_STARTS:
        cb = math.cos(start * _STEP)          # Python-float splat constants
        sb = math.sin(start * _STEP)
        # cos/sin(theta_base + start*STEP) by angle addition.
        cth = cos_base * cb - sin_base * sb                       # (BLK, 1)
        sth = sin_base * cb + cos_base * sb
        p1x = ka * cth - kb * sth + x1                            # (BLK, 1)
        p1y = kc * cth + kd * sth + y1
        dx = p1x - p2x8                                           # (BLK, NPAD)
        dy = p1y - p2y8
        sq = dx * dx + dy * dy                                    # squared distances
        lane_min = jnp.min(sq, axis=1, keepdims=True)             # (BLK, 1)
        if col_min is None:
            col_min, row_maxmin = sq, lane_min
        else:
            col_min = jnp.minimum(col_min, sq)
            row_maxmin = jnp.maximum(row_maxmin, lane_min)

    # directed(p1->p2)^2 = max_i min_j sq ; directed(p2->p1)^2 = max_j min_i sq
    d1_sq = jnp.max(row_maxmin, axis=0, keepdims=True)                        # (1, 1)
    d2_sq = jnp.max(jnp.min(col_min, axis=0, keepdims=True), axis=1, keepdims=True)
    # One final sqrt on the (1,1) max (sqrt is monotone).
    out_ref[0] = jnp.sqrt(jnp.maximum(d1_sq, d2_sq))


def _build_call(batch):
    return pl.pallas_call(
        _hausdorff_kernel,
        out_shape=jax.ShapeDtypeStruct((batch, 1, 1), jnp.float32),
        grid=(batch,),
        in_specs=[
            pl.BlockSpec(memory_space=pltpu.MemorySpace.SMEM),    # ellipse1 params (B,5)
            pl.BlockSpec(memory_space=pltpu.MemorySpace.SMEM),    # ellipse2 params (B,5)
        ],
        out_specs=pl.BlockSpec((1, 1, 1), lambda b: (b, 0, 0)),
        compiler_params=pltpu.CompilerParams(
            dimension_semantics=("parallel",)),                   # both TCs on v7x
    )


def custom_hausdorff_loss(ellipse1, ellipse2):
    """Forward pass of CustomHausdorffLoss: scalar float32 Hausdorff distance."""
    e1 = jnp.asarray(ellipse1, dtype=jnp.float32).reshape(1, 5)
    e2 = jnp.asarray(ellipse2, dtype=jnp.float32).reshape(1, 5)
    out = _build_call(1)(e1, e2)
    return out[0, 0, 0]


def custom_hausdorff_loss_batched(ellipse1_batch, ellipse2_batch):
    """Batched variant: (B,5),(B,5) -> (B,) distances in one pallas_call."""
    e1 = jnp.asarray(ellipse1_batch, dtype=jnp.float32).reshape(-1, 5)
    e2 = jnp.asarray(ellipse2_batch, dtype=jnp.float32).reshape(-1, 5)
    out = _build_call(e1.shape[0])(e1, e2)
    return out[:, 0, 0]


# ----------------------------- pure-JAX reference -----------------------------

def _generate_ellipse_points_xy(x, y, semi_major, semi_minor, rotation,
                                num_points=NUM_POINTS):
    theta = jnp.linspace(0.0, 2.0 * jnp.pi, num_points)
    ex = semi_major * jnp.cos(theta)
    ey = semi_minor * jnp.sin(theta)
    cos_r = jnp.cos(rotation)
    sin_r = jnp.sin(rotation)
    px = cos_r * ex - sin_r * ey + x
    py = sin_r * ex + cos_r * ey + y
    return px.astype(jnp.float32), py.astype(jnp.float32)


def _reference_loss(ellipse1, ellipse2):
    x1, y1, a1, b1, t1 = (ellipse1[i] for i in range(5))
    x2, y2, a2, b2, t2 = (ellipse2[i] for i in range(5))
    p1x, p1y = _generate_ellipse_points_xy(x1, y1, a1, b1, t1)
    p2x, p2y = _generate_ellipse_points_xy(x2, y2, a2, b2, t2)
    dx = p1x[:, None] - p2x[None, :]
    dy = p1y[:, None] - p2y[None, :]
    dist = jnp.sqrt(dx * dx + dy * dy)
    d1 = jnp.max(jnp.min(dist, axis=1))
    d2 = jnp.max(jnp.min(dist, axis=0))
    return jnp.maximum(d1, d2)


if __name__ == "__main__":
    key = jax.random.PRNGKey(0)
    k1, k2 = jax.random.split(key)

    # [x, y, semi_major, semi_minor, rotation]
    base1 = jnp.array([0.5, -0.3, 2.0, 1.0, 0.4], dtype=jnp.float32)
    base2 = jnp.array([-0.2, 0.6, 1.5, 0.8, -0.7], dtype=jnp.float32)

    # --- single pair (matches the PyTorch module interface) ---
    ellipse1 = base1 + 0.05 * jax.random.normal(k1, (5,), dtype=jnp.float32)
    ellipse2 = base2 + 0.05 * jax.random.normal(k2, (5,), dtype=jnp.float32)
    loss = custom_hausdorff_loss(ellipse1, ellipse2)
    jax.block_until_ready(loss)
    ref = _reference_loss(ellipse1, ellipse2)
    assert loss.dtype == jnp.float32
    assert jnp.allclose(loss, ref, rtol=1e-4, atol=1e-4), (loss, ref)

    # --- batched pairs (amortizes launch overhead; parallel grid for v7x) ---
    B = 4
    e1b = base1[None, :] + 0.05 * jax.random.normal(k1, (B, 5), dtype=jnp.float32)
    e2b = base2[None, :] + 0.05 * jax.random.normal(k2, (B, 5), dtype=jnp.float32)
    losses = custom_hausdorff_loss_batched(e1b, e2b)
    jax.block_until_ready(losses)
    refs = jnp.stack([_reference_loss(e1b[i], e2b[i]) for i in range(B)])
    assert losses.shape == (B,) and losses.dtype == jnp.float32
    assert jnp.allclose(losses, refs, rtol=1e-4, atol=1e-4), (losses, refs)

    print("KERNEL_OK")
</pallas_src>

<mosaic_0001>
module attributes {stable_mosaic.version = 11 : i64} {
  func.func @_hausdorff_kernel(%arg0: i32, %arg1: memref<1x5xf32, #tpu.memory_space<smem>>, %arg2: memref<1x5xf32, #tpu.memory_space<smem>>, %arg3: memref<1x1x1xf32, #tpu.memory_space<vmem>>) attributes {dimension_semantics = [#tpu.dimension_semantics<parallel>], iteration_bounds = array<i64: 1>, scalar_prefetch = 0 : i64, scratch_operands = 0 : i64, tpu.core_type = #tpu.core_type<tc>, window_params = [{transform_indices = @transform_0, window_bounds = array<i64: 1, 5>}, {transform_indices = @transform_1, window_bounds = array<i64: 1, 5>}, {transform_indices = @transform_2, window_bounds = array<i64: 1, 1, 1>}]} {
    %0 = arith.index_cast %arg0 : i32 to index
    %c0 = arith.constant 0 : index
    %1 = memref.load %arg1[%0, %c0] : memref<1x5xf32, #tpu.memory_space<smem>>
    %2 = arith.index_cast %arg0 : i32 to index
    %c1 = arith.constant 1 : index
    %3 = memref.load %arg1[%2, %c1] : memref<1x5xf32, #tpu.memory_space<smem>>
    %4 = arith.index_cast %arg0 : i32 to index
    %c2 = arith.constant 2 : index
    %5 = memref.load %arg1[%4, %c2] : memref<1x5xf32, #tpu.memory_space<smem>>
    %6 = arith.index_cast %arg0 : i32 to index
    %c3 = arith.constant 3 : index
    %7 = memref.load %arg1[%6, %c3] : memref<1x5xf32, #tpu.memory_space<smem>>
    %8 = arith.index_cast %arg0 : i32 to index
    %c0_0 = arith.constant 0 : index
    %9 = memref.load %arg2[%8, %c0_0] : memref<1x5xf32, #tpu.memory_space<smem>>
    %10 = arith.index_cast %arg0 : i32 to index
    %c1_1 = arith.constant 1 : index
    %11 = memref.load %arg2[%10, %c1_1] : memref<1x5xf32, #tpu.memory_space<smem>>
    %12 = arith.index_cast %arg0 : i32 to index
    %c2_2 = arith.constant 2 : index
    %13 = memref.load %arg2[%12, %c2_2] : memref<1x5xf32, #tpu.memory_space<smem>>
    %14 = arith.index_cast %arg0 : i32 to index
    %c3_3 = arith.constant 3 : index
    %15 = memref.load %arg2[%14, %c3_3] : memref<1x5xf32, #tpu.memory_space<smem>>
    %16 = arith.index_cast %arg0 : i32 to index
    %c4 = arith.constant 4 : index
    %17 = memref.load %arg1[%16, %c4] : memref<1x5xf32, #tpu.memory_space<smem>>
    %18 = vector.broadcast %17 : f32 to vector<1x1xf32>
    %19 = arith.index_cast %arg0 : i32 to index
    %c4_4 = arith.constant 4 : index
    %20 = memref.load %arg2[%19, %c4_4] : memref<1x5xf32, #tpu.memory_space<smem>>
    %21 = vector.broadcast %20 : f32 to vector<1x1xf32>
    %22 = math.cos %18 : vector<1x1xf32>
    %23 = math.sin %18 : vector<1x1xf32>
    %24 = math.cos %21 : vector<1x1xf32>
    %25 = math.sin %21 : vector<1x1xf32>
    %26 = tpu.iota {dimensions = array<i32: 1>} : vector<1x128xi32>
    %c99_i32 = arith.constant 99 : i32
    %27 = vector.broadcast %c99_i32 : i32 to vector<1x128xi32>
    %28 = arith.minsi %26, %27 : vector<1x128xi32>
    %29 = arith.sitofp %28 : vector<1x128xi32> to vector<1x128xf32>
    %cst = arith.constant 0.0634665191 : f32
    %30 = vector.broadcast %cst : f32 to vector<1x128xf32>
    %31 = arith.mulf %29, %30 : vector<1x128xf32>
    %32 = math.cos %31 : vector<1x128xf32>
    %33 = math.sin %31 : vector<1x128xf32>
    %34 = vector.broadcast %13 : f32 to vector<1x1xf32>
    %35 = arith.mulf %24, %34 : vector<1x1xf32>
    %36 = vector.broadcast %35 : vector<1x1xf32> to vector<1x128xf32>
    %37 = arith.mulf %36, %32 : vector<1x128xf32>
    %38 = vector.broadcast %15 : f32 to vector<1x1xf32>
    %39 = arith.mulf %25, %38 : vector<1x1xf32>
    %40 = vector.broadcast %39 : vector<1x1xf32> to vector<1x128xf32>
    %41 = arith.mulf %40, %33 : vector<1x128xf32>
    %42 = arith.subf %37, %41 : vector<1x128xf32>
    %43 = vector.broadcast %9 : f32 to vector<1x128xf32>
    %44 = arith.addf %42, %43 : vector<1x128xf32>
    %45 = vector.broadcast %13 : f32 to vector<1x1xf32>
    %46 = arith.mulf %25, %45 : vector<1x1xf32>
    %47 = vector.broadcast %46 : vector<1x1xf32> to vector<1x128xf32>
    %48 = arith.mulf %47, %32 : vector<1x128xf32>
    %49 = vector.broadcast %15 : f32 to vector<1x1xf32>
    %50 = arith.mulf %24, %49 : vector<1x1xf32>
    %51 = vector.broadcast %50 : vector<1x1xf32> to vector<1x128xf32>
    %52 = arith.mulf %51, %33 : vector<1x128xf32>
    %53 = arith.addf %48, %52 : vector<1x128xf32>
    %54 = vector.broadcast %11 : f32 to vector<1x128xf32>
    %55 = arith.addf %53, %54 : vector<1x128xf32>
    %56 = vector.shape_cast %44 : vector<1x128xf32> to vector<1x128xf32>
    %57 = vector.broadcast %56 : vector<1x128xf32> to vector<8x128xf32>
    %58 = vector.shape_cast %55 : vector<1x128xf32> to vector<1x128xf32>
    %59 = vector.broadcast %58 : vector<1x128xf32> to vector<8x128xf32>
    %60 = tpu.iota {dimensions = array<i32: 0>} : vector<8x1xi32>
    %61 = arith.sitofp %60 : vector<8x1xi32> to vector<8x1xf32>
    %cst_5 = arith.constant 0.0634665191 : f32
    %62 = vector.broadcast %cst_5 : f32 to vector<8x1xf32>
    %63 = arith.mulf %61, %62 : vector<8x1xf32>
    %64 = math.cos %63 : vector<8x1xf32>
    %65 = math.sin %63 : vector<8x1xf32>
    %66 = vector.broadcast %5 : f32 to vector<1x1xf32>
    %67 = arith.mulf %22, %66 : vector<1x1xf32>
    %68 = vector.broadcast %7 : f32 to vector<1x1xf32>
    %69 = arith.mulf %23, %68 : vector<1x1xf32>
    %70 = vector.broadcast %5 : f32 to vector<1x1xf32>
    %71 = arith.mulf %23, %70 : vector<1x1xf32>
    %72 = vector.broadcast %7 : f32 to vector<1x1xf32>
    %73 = arith.mulf %22, %72 : vector<1x1xf32>
    %cst_6 = arith.constant 1.000000e+00 : f32
    %74 = vector.broadcast %cst_6 : f32 to vector<8x1xf32>
    %75 = arith.mulf %64, %74 : vector<8x1xf32>
    %cst_7 = arith.constant 0.000000e+00 : f32
    %76 = vector.broadcast %cst_7 : f32 to vector<8x1xf32>
    %77 = arith.mulf %65, %76 : vector<8x1xf32>
    %78 = arith.subf %75, %77 : vector<8x1xf32>
    %cst_8 = arith.constant 1.000000e+00 : f32
    %79 = vector.broadcast %cst_8 : f32 to vector<8x1xf32>
    %80 = arith.mulf %65, %79 : vector<8x1xf32>
    %cst_9 = arith.constant 0.000000e+00 : f32
    %81 = vector.broadcast %cst_9 : f32 to vector<8x1xf32>
    %82 = arith.mulf %64, %81 : vector<8x1xf32>
    %83 = arith.addf %80, %82 : vector<8x1xf32>
    %84 = vector.broadcast %67 : vector<1x1xf32> to vector<8x1xf32>
    %85 = arith.mulf %84, %78 : vector<8x1xf32>
    %86 = vector.broadcast %69 : vector<1x1xf32> to vector<8x1xf32>
    %87 = arith.mulf %86, %83 : vector<8x1xf32>
    %88 = arith.subf %85, %87 : vector<8x1xf32>
    %89 = vector.broadcast %1 : f32 to vector<8x1xf32>
    %90 = arith.addf %88, %89 : vector<8x1xf32>
    %91 = vector.broadcast %71 : vector<1x1xf32> to vector<8x1xf32>
    %92 = arith.mulf %91, %78 : vector<8x1xf32>
    %93 = vector.broadcast %73 : vector<1x1xf32> to vector<8x1xf32>
    %94 = arith.mulf %93, %83 : vector<8x1xf32>
    %95 = arith.addf %92, %94 : vector<8x1xf32>
    %96 = vector.broadcast %3 : f32 to vector<8x1xf32>
    %97 = arith.addf %95, %96 : vector<8x1xf32>
    %98 = vector.broadcast %90 : vector<8x1xf32> to vector<8x128xf32>
    %99 = arith.subf %98, %57 : vector<8x128xf32>
    %100 = vector.broadcast %97 : vector<8x1xf32> to vector<8x128xf32>
    %101 = arith.subf %100, %59 : vector<8x128xf32>
    %102 = arith.mulf %99, %99 : vector<8x128xf32>
    %103 = arith.mulf %101, %101 : vector<8x128xf32>
    %104 = arith.addf %102, %103 : vector<8x128xf32>
    %cst_10 = arith.constant dense<0x7F800000> : vector<8xf32>
    %105 = vector.multi_reduction <minimumf>, %104, %cst_10 [1] : vector<8x128xf32> to vector<8xf32>
    %106 = vector.shape_cast %105 : vector<8xf32> to vector<8x1xf32>
    %cst_11 = arith.constant 0.873849391 : f32
    %107 = vector.broadcast %cst_11 : f32 to vector<8x1xf32>
    %108 = arith.mulf %64, %107 : vector<8x1xf32>
    %cst_12 = arith.constant 0.486196727 : f32
    %109 = vector.broadcast %cst_12 : f32 to vector<8x1xf32>
    %110 = arith.mulf %65, %109 : vector<8x1xf32>
    %111 = arith.subf %108, %110 : vector<8x1xf32>
    %cst_13 = arith.constant 0.873849391 : f32
    %112 = vector.broadcast %cst_13 : f32 to vector<8x1xf32>
    %113 = arith.mulf %65, %112 : vector<8x1xf32>
    %cst_14 = arith.constant 0.486196727 : f32
    %114 = vector.broadcast %cst_14 : f32 to vector<8x1xf32>
    %115 = arith.mulf %64, %114 : vector<8x1xf32>
    %116 = arith.addf %113, %115 : vector<8x1xf32>
    %117 = vector.broadcast %67 : vector<1x1xf32> to vector<8x1xf32>
    %118 = arith.mulf %117, %111 : vector<8x1xf32>
    %119 = vector.broadcast %69 : vector<1x1xf32> to vector<8x1xf32>
    %120 = arith.mulf %119, %116 : vector<8x1xf32>
    %121 = arith.subf %118, %120 : vector<8x1xf32>
    %122 = vector.broadcast %1 : f32 to vector<8x1xf32>
    %123 = arith.addf %121, %122 : vector<8x1xf32>
    %124 = vector.broadcast %71 : vector<1x1xf32> to vector<8x1xf32>
    %125 = arith.mulf %124, %111 : vector<8x1xf32>
    %126 = vector.broadcast %73 : vector<1x1xf32> to vector<8x1xf32>
    %127 = arith.mulf %126, %116 : vector<8x1xf32>
    %128 = arith.addf %125, %127 : vector<8x1xf32>
    %129 = vector.broadcast %3 : f32 to vector<8x1xf32>
    %130 = arith.addf %128, %129 : vector<8x1xf32>
    %131 = vector.broadcast %123 : vector<8x1xf32> to vector<8x128xf32>
    %132 = arith.subf %131, %57 : vector<8x128xf32>
    %133 = vector.broadcast %130 : vector<8x1xf32> to vector<8x128xf32>
    %134 = arith.subf %133, %59 : vector<8x128xf32>
    %135 = arith.mulf %132, %132 : vector<8x128xf32>
    %136 = arith.mulf %134, %134 : vector<8x128xf32>
    %137 = arith.addf %135, %136 : vector<8x128xf32>
    %cst_15 = arith.constant dense<0x7F800000> : vector<8xf32>
    %138 = vector.multi_reduction <minimumf>, %137, %cst_15 [1] : vector<8x128xf32> to vector<8xf32>
    %139 = vector.shape_cast %138 : vector<8xf32> to vector<8x1xf32>
    %140 = arith.minimumf %104, %137 : vector<8x128xf32>
    %141 = arith.maximumf %106, %139 : vector<8x1xf32>
    %cst_16 = arith.constant 0.527225494 : f32
    %142 = vector.broadcast %cst_16 : f32 to vector<8x1xf32>
    %143 = arith.mulf %64, %142 : vector<8x1xf32>
    %cst_17 = arith.constant 0.849725425 : f32
    %144 = vector.broadcast %cst_17 : f32 to vector<8x1xf32>
    %145 = arith.mulf %65, %144 : vector<8x1xf32>
    %146 = arith.subf %143, %145 : vector<8x1xf32>
    %cst_18 = arith.constant 0.527225494 : f32
    %147 = vector.broadcast %cst_18 : f32 to vector<8x1xf32>
    %148 = arith.mulf %65, %147 : vector<8x1xf32>
    %cst_19 = arith.constant 0.849725425 : f32
    %149 = vector.broadcast %cst_19 : f32 to vector<8x1xf32>
    %150 = arith.mulf %64, %149 : vector<8x1xf32>
    %151 = arith.addf %148, %150 : vector<8x1xf32>
    %152 = vector.broadcast %67 : vector<1x1xf32> to vector<8x1xf32>
    %153 = arith.mulf %152, %146 : vector<8x1xf32>
    %154 = vector.broadcast %69 : vector<1x1xf32> to vector<8x1xf32>
    %155 = arith.mulf %154, %151 : vector<8x1xf32>
    %156 = arith.subf %153, %155 : vector<8x1xf32>
    %157 = vector.broadcast %1 : f32 to vector<8x1xf32>
    %158 = arith.addf %156, %157 : vector<8x1xf32>
    %159 = vector.broadcast %71 : vector<1x1xf32> to vector<8x1xf32>
    %160 = arith.mulf %159, %146 : vector<8x1xf32>
    %161 = vector.broadcast %73 : vector<1x1xf32> to vector<8x1xf32>
    %162 = arith.mulf %161, %151 : vector<8x1xf32>
    %163 = arith.addf %160, %162 : vector<8x1xf32>
    %164 = vector.broadcast %3 : f32 to vector<8x1xf32>
    %165 = arith.addf %163, %164 : vector<8x1xf32>
    %166 = vector.broadcast %158 : vector<8x1xf32> to vector<8x128xf32>
    %167 = arith.subf %166, %57 : vector<8x128xf32>
    %168 = vector.broadcast %165 : vector<8x1xf32> to vector<8x128xf32>
    %169 = arith.subf %168, %59 : vector<8x128xf32>
    %170 = arith.mulf %167, %167 : vector<8x128xf32>
    %171 = arith.mulf %169, %169 : vector<8x128xf32>
    %172 = arith.addf %170, %171 : vector<8x128xf32>
    %cst_20 = arith.constant dense<0x7F800000> : vector<8xf32>
    %173 = vector.multi_reduction <minimumf>, %172, %cst_20 [1] : vector<8x128xf32> to vector<8xf32>
    %174 = vector.shape_cast %173 : vector<8xf32> to vector<8x1xf32>
    %175 = arith.minimumf %140, %172 : vector<8x128xf32>
    %176 = arith.maximumf %141, %174 : vector<8x1xf32>
    %cst_21 = arith.constant 0.0475819148 : f32
    %177 = vector.broadcast %cst_21 : f32 to vector<8x1xf32>
    %178 = arith.mulf %64, %177 : vector<8x1xf32>
    %cst_22 = arith.constant 0.998867332 : f32
    %179 = vector.broadcast %cst_22 : f32 to vector<8x1xf32>
    %180 = arith.mulf %65, %179 : vector<8x1xf32>
    %181 = arith.subf %178, %180 : vector<8x1xf32>
    %cst_23 = arith.constant 0.0475819148 : f32
    %182 = vector.broadcast %cst_23 : f32 to vector<8x1xf32>
    %183 = arith.mulf %65, %182 : vector<8x1xf32>
    %cst_24 = arith.constant 0.998867332 : f32
    %184 = vector.broadcast %cst_24 : f32 to vector<8x1xf32>
    %185 = arith.mulf %64, %184 : vector<8x1xf32>
    %186 = arith.addf %183, %185 : vector<8x1xf32>
    %187 = vector.broadcast %67 : vector<1x1xf32> to vector<8x1xf32>
    %188 = arith.mulf %187, %181 : vector<8x1xf32>
    %189 = vector.broadcast %69 : vector<1x1xf32> to vector<8x1xf32>
    %190 = arith.mulf %189, %186 : vector<8x1xf32>
    %191 = arith.subf %188, %190 : vector<8x1xf32>
    %192 = vector.broadcast %1 : f32 to vector<8x1xf32>
    %193 = arith.addf %191, %192 : vector<8x1xf32>
    %194 = vector.broadcast %71 : vector<1x1xf32> to vector<8x1xf32>
    %195 = arith.mulf %194, %181 : vector<8x1xf32>
    %196 = vector.broadcast %73 : vector<1x1xf32> to vector<8x1xf32>
    %197 = arith.mulf %196, %186 : vector<8x1xf32>
    %198 = arith.addf %195, %197 : vector<8x1xf32>
    %199 = vector.broadcast %3 : f32 to vector<8x1xf32>
    %200 = arith.addf %198, %199 : vector<8x1xf32>
    %201 = vector.broadcast %193 : vector<8x1xf32> to vector<8x128xf32>
    %202 = arith.subf %201, %57 : vector<8x128xf32>
    %203 = vector.broadcast %200 : vector<8x1xf32> to vector<8x128xf32>
    %204 = arith.subf %203, %59 : vector<8x128xf32>
    %205 = arith.mulf %202, %202 : vector<8x128xf32>
    %206 = arith.mulf %204, %204 : vector<8x128xf32>
    %207 = arith.addf %205, %206 : vector<8x128xf32>
    %cst_25 = arith.constant dense<0x7F800000> : vector<8xf32>
    %208 = vector.multi_reduction <minimumf>, %207, %cst_25 [1] : vector<8x128xf32> to vector<8xf32>
    %209 = vector.shape_cast %208 : vector<8xf32> to vector<8x1xf32>
    %210 = arith.minimumf %175, %207 : vector<8x128xf32>
    %211 = arith.maximumf %176, %209 : vector<8x1xf32>
    %cst_26 = arith.constant -0.444066614 : f32
    %212 = vector.broadcast %cst_26 : f32 to vector<8x1xf32>
    %213 = arith.mulf %64, %212 : vector<8x1xf32>
    %cst_27 = arith.constant 0.895993769 : f32
    %214 = vector.broadcast %cst_27 : f32 to vector<8x1xf32>
    %215 = arith.mulf %65, %214 : vector<8x1xf32>
    %216 = arith.subf %213, %215 : vector<8x1xf32>
    %cst_28 = arith.constant -0.444066614 : f32
    %217 = vector.broadcast %cst_28 : f32 to vector<8x1xf32>
    %218 = arith.mulf %65, %217 : vector<8x1xf32>
    %cst_29 = arith.constant 0.895993769 : f32
    %219 = vector.broadcast %cst_29 : f32 to vector<8x1xf32>
    %220 = arith.mulf %64, %219 : vector<8x1xf32>
    %221 = arith.addf %218, %220 : vector<8x1xf32>
    %222 = vector.broadcast %67 : vector<1x1xf32> to vector<8x1xf32>
    %223 = arith.mulf %222, %216 : vector<8x1xf32>
    %224 = vector.broadcast %69 : vector<1x1xf32> to vector<8x1xf32>
    %225 = arith.mulf %224, %221 : vector<8x1xf32>
    %226 = arith.subf %223, %225 : vector<8x1xf32>
    %227 = vector.broadcast %1 : f32 to vector<8x1xf32>
    %228 = arith.addf %226, %227 : vector<8x1xf32>
    %229 = vector.broadcast %71 : vector<1x1xf32> to vector<8x1xf32>
    %230 = arith.mulf %229, %216 : vector<8x1xf32>
    %231 = vector.broadcast %73 : vector<1x1xf32> to vector<8x1xf32>
    %232 = arith.mulf %231, %221 : vector<8x1xf32>
    %233 = arith.addf %230, %232 : vector<8x1xf32>
    %234 = vector.broadcast %3 : f32 to vector<8x1xf32>
    %235 = arith.addf %233, %234 : vector<8x1xf32>
    %236 = vector.broadcast %228 : vector<8x1xf32> to vector<8x128xf32>
    %237 = arith.subf %236, %57 : vector<8x128xf32>
    %238 = vector.broadcast %235 : vector<8x1xf32> to vector<8x128xf32>
    %239 = arith.subf %238, %59 : vector<8x128xf32>
    %240 = arith.mulf %237, %237 : vector<8x128xf32>
    %241 = arith.mulf %239, %239 : vector<8x128xf32>
    %242 = arith.addf %240, %241 : vector<8x128xf32>
    %cst_30 = arith.constant dense<0x7F800000> : vector<8xf32>
    %243 = vector.multi_reduction <minimumf>, %242, %cst_30 [1] : vector<8x128xf32> to vector<8xf32>
    %244 = vector.shape_cast %243 : vector<8xf32> to vector<8x1xf32>
    %245 = arith.minimumf %210, %242 : vector<8x128xf32>
    %246 = arith.maximumf %211, %244 : vector<8x1xf32>
    %cst_31 = arith.constant -0.823676586 : f32
    %247 = vector.broadcast %cst_31 : f32 to vector<8x1xf32>
    %248 = arith.mulf %64, %247 : vector<8x1xf32>
    %cst_32 = arith.constant 0.567059875 : f32
    %249 = vector.broadcast %cst_32 : f32 to vector<8x1xf32>
    %250 = arith.mulf %65, %249 : vector<8x1xf32>
    %251 = arith.subf %248, %250 : vector<8x1xf32>
    %cst_33 = arith.constant -0.823676586 : f32
    %252 = vector.broadcast %cst_33 : f32 to vector<8x1xf32>
    %253 = arith.mulf %65, %252 : vector<8x1xf32>
    %cst_34 = arith.constant 0.567059875 : f32
    %254 = vector.broadcast %cst_34 : f32 to vector<8x1xf32>
    %255 = arith.mulf %64, %254 : vector<8x1xf32>
    %256 = arith.addf %253, %255 : vector<8x1xf32>
    %257 = vector.broadcast %67 : vector<1x1xf32> to vector<8x1xf32>
    %258 = arith.mulf %257, %251 : vector<8x1xf32>
    %259 = vector.broadcast %69 : vector<1x1xf32> to vector<8x1xf32>
    %260 = arith.mulf %259, %256 : vector<8x1xf32>
    %261 = arith.subf %258, %260 : vector<8x1xf32>
    %262 = vector.broadcast %1 : f32 to vector<8x1xf32>
    %263 = arith.addf %261, %262 : vector<8x1xf32>
    %264 = vector.broadcast %71 : vector<1x1xf32> to vector<8x1xf32>
    %265 = arith.mulf %264, %251 : vector<8x1xf32>
    %266 = vector.broadcast %73 : vector<1x1xf32> to vector<8x1xf32>
    %267 = arith.mulf %266, %256 : vector<8x1xf32>
    %268 = arith.addf %265, %267 : vector<8x1xf32>
    %269 = vector.broadcast %3 : f32 to vector<8x1xf32>
    %270 = arith.addf %268, %269 : vector<8x1xf32>
    %271 = vector.broadcast %263 : vector<8x1xf32> to vector<8x128xf32>
    %272 = arith.subf %271, %57 : vector<8x128xf32>
    %273 = vector.broadcast %270 : vector<8x1xf32> to vector<8x128xf32>
    %274 = arith.subf %273, %59 : vector<8x128xf32>
    %275 = arith.mulf %272, %272 : vector<8x128xf32>
    %276 = arith.mulf %274, %274 : vector<8x128xf32>
    %277 = arith.addf %275, %276 : vector<8x128xf32>
    %cst_35 = arith.constant dense<0x7F800000> : vector<8xf32>
    %278 = vector.multi_reduction <minimumf>, %277, %cst_35 [1] : vector<8x128xf32> to vector<8xf32>
    %279 = vector.shape_cast %278 : vector<8xf32> to vector<8x1xf32>
    %280 = arith.minimumf %245, %277 : vector<8x128xf32>
    %281 = arith.maximumf %246, %279 : vector<8x1xf32>
    %cst_36 = arith.constant -0.995471894 : f32
    %282 = vector.broadcast %cst_36 : f32 to vector<8x1xf32>
    %283 = arith.mulf %64, %282 : vector<8x1xf32>
    %cst_37 = arith.constant 0.0950560421 : f32
    %284 = vector.broadcast %cst_37 : f32 to vector<8x1xf32>
    %285 = arith.mulf %65, %284 : vector<8x1xf32>
    %286 = arith.subf %283, %285 : vector<8x1xf32>
    %cst_38 = arith.constant -0.995471894 : f32
    %287 = vector.broadcast %cst_38 : f32 to vector<8x1xf32>
    %288 = arith.mulf %65, %287 : vector<8x1xf32>
    %cst_39 = arith.constant 0.0950560421 : f32
    %289 = vector.broadcast %cst_39 : f32 to vector<8x1xf32>
    %290 = arith.mulf %64, %289 : vector<8x1xf32>
    %291 = arith.addf %288, %290 : vector<8x1xf32>
    %292 = vector.broadcast %67 : vector<1x1xf32> to vector<8x1xf32>
    %293 = arith.mulf %292, %286 : vector<8x1xf32>
    %294 = vector.broadcast %69 : vector<1x1xf32> to vector<8x1xf32>
    %295 = arith.mulf %294, %291 : vector<8x1xf32>
    %296 = arith.subf %293, %295 : vector<8x1xf32>
    %297 = vector.broadcast %1 : f32 to vector<8x1xf32>
    %298 = arith.addf %296, %297 : vector<8x1xf32>
    %299 = vector.broadcast %71 : vector<1x1xf32> to vector<8x1xf32>
    %300 = arith.mulf %299, %286 : vector<8x1xf32>
    %301 = vector.broadcast %73 : vector<1x1xf32> to vector<8x1xf32>
    %302 = arith.mulf %301, %291 : vector<8x1xf32>
    %303 = arith.addf %300, %302 : vector<8x1xf32>
    %304 = vector.broadcast %3 : f32 to vector<8x1xf32>
    %305 = arith.addf %303, %304 : vector<8x1xf32>
    %306 = vector.broadcast %298 : vector<8x1xf32> to vector<8x128xf32>
    %307 = arith.subf %306, %57 : vector<8x128xf32>
    %308 = vector.broadcast %305 : vector<8x1xf32> to vector<8x128xf32>
    %309 = arith.subf %308, %59 : vector<8x128xf32>
    %310 = arith.mulf %307, %307 : vector<8x128xf32>
    %311 = arith.mulf %309, %309 : vector<8x128xf32>
    %312 = arith.addf %310, %311 : vector<8x128xf32>
    %cst_40 = arith.constant dense<0x7F800000> : vector<8xf32>
    %313 = vector.multi_reduction <minimumf>, %312, %cst_40 [1] : vector<8x128xf32> to vector<8xf32>
    %314 = vector.shape_cast %313 : vector<8xf32> to vector<8x1xf32>
    %315 = arith.minimumf %280, %312 : vector<8x128xf32>
    %316 = arith.maximumf %281, %314 : vector<8x1xf32>
    %cst_41 = arith.constant -0.916108429 : f32
    %317 = vector.broadcast %cst_41 : f32 to vector<8x1xf32>
    %318 = arith.mulf %64, %317 : vector<8x1xf32>
    %cst_42 = arith.constant -0.400930524 : f32
    %319 = vector.broadcast %cst_42 : f32 to vector<8x1xf32>
    %320 = arith.mulf %65, %319 : vector<8x1xf32>
    %321 = arith.subf %318, %320 : vector<8x1xf32>
    %cst_43 = arith.constant -0.916108429 : f32
    %322 = vector.broadcast %cst_43 : f32 to vector<8x1xf32>
    %323 = arith.mulf %65, %322 : vector<8x1xf32>
    %cst_44 = arith.constant -0.400930524 : f32
    %324 = vector.broadcast %cst_44 : f32 to vector<8x1xf32>
    %325 = arith.mulf %64, %324 : vector<8x1xf32>
    %326 = arith.addf %323, %325 : vector<8x1xf32>
    %327 = vector.broadcast %67 : vector<1x1xf32> to vector<8x1xf32>
    %328 = arith.mulf %327, %321 : vector<8x1xf32>
    %329 = vector.broadcast %69 : vector<1x1xf32> to vector<8x1xf32>
    %330 = arith.mulf %329, %326 : vector<8x1xf32>
    %331 = arith.subf %328, %330 : vector<8x1xf32>
    %332 = vector.broadcast %1 : f32 to vector<8x1xf32>
    %333 = arith.addf %331, %332 : vector<8x1xf32>
    %334 = vector.broadcast %71 : vector<1x1xf32> to vector<8x1xf32>
    %335 = arith.mulf %334, %321 : vector<8x1xf32>
    %336 = vector.broadcast %73 : vector<1x1xf32> to vector<8x1xf32>
    %337 = arith.mulf %336, %326 : vector<8x1xf32>
    %338 = arith.addf %335, %337 : vector<8x1xf32>
    %339 = vector.broadcast %3 : f32 to vector<8x1xf32>
    %340 = arith.addf %338, %339 : vector<8x1xf32>
    %341 = vector.broadcast %333 : vector<8x1xf32> to vector<8x128xf32>
    %342 = arith.subf %341, %57 : vector<8x128xf32>
    %343 = vector.broadcast %340 : vector<8x1xf32> to vector<8x128xf32>
    %344 = arith.subf %343, %59 : vector<8x128xf32>
    %345 = arith.mulf %342, %342 : vector<8x128xf32>
    %346 = arith.mulf %344, %344 : vector<8x128xf32>
    %347 = arith.addf %345, %346 : vector<8x128xf32>
    %cst_45 = arith.constant dense<0x7F800000> : vector<8xf32>
    %348 = vector.multi_reduction <minimumf>, %347, %cst_45 [1] : vector<8x128xf32> to vector<8xf32>
    %349 = vector.shape_cast %348 : vector<8xf32> to vector<8x1xf32>
    %350 = arith.minimumf %315, %347 : vector<8x128xf32>
    %351 = arith.maximumf %316, %349 : vector<8x1xf32>
    %cst_46 = arith.constant -0.605609714 : f32
    %352 = vector.broadcast %cst_46 : f32 to vector<8x1xf32>
    %353 = arith.mulf %64, %352 : vector<8x1xf32>
    %cst_47 = arith.constant -0.795761824 : f32
    %354 = vector.broadcast %cst_47 : f32 to vector<8x1xf32>
    %355 = arith.mulf %65, %354 : vector<8x1xf32>
    %356 = arith.subf %353, %355 : vector<8x1xf32>
    %cst_48 = arith.constant -0.605609714 : f32
    %357 = vector.broadcast %cst_48 : f32 to vector<8x1xf32>
    %358 = arith.mulf %65, %357 : vector<8x1xf32>
    %cst_49 = arith.constant -0.795761824 : f32
    %359 = vector.broadcast %cst_49 : f32 to vector<8x1xf32>
    %360 = arith.mulf %64, %359 : vector<8x1xf32>
    %361 = arith.addf %358, %360 : vector<8x1xf32>
    %362 = vector.broadcast %67 : vector<1x1xf32> to vector<8x1xf32>
    %363 = arith.mulf %362, %356 : vector<8x1xf32>
    %364 = vector.broadcast %69 : vector<1x1xf32> to vector<8x1xf32>
    %365 = arith.mulf %364, %361 : vector<8x1xf32>
    %366 = arith.subf %363, %365 : vector<8x1xf32>
    %367 = vector.broadcast %1 : f32 to vector<8x1xf32>
    %368 = arith.addf %366, %367 : vector<8x1xf32>
    %369 = vector.broadcast %71 : vector<1x1xf32> to vector<8x1xf32>
    %370 = arith.mulf %369, %356 : vector<8x1xf32>
    %371 = vector.broadcast %73 : vector<1x1xf32> to vector<8x1xf32>
    %372 = arith.mulf %371, %361 : vector<8x1xf32>
    %373 = arith.addf %370, %372 : vector<8x1xf32>
    %374 = vector.broadcast %3 : f32 to vector<8x1xf32>
    %375 = arith.addf %373, %374 : vector<8x1xf32>
    %376 = vector.broadcast %368 : vector<8x1xf32> to vector<8x128xf32>
    %377 = arith.subf %376, %57 : vector<8x128xf32>
    %378 = vector.broadcast %375 : vector<8x1xf32> to vector<8x128xf32>
    %379 = arith.subf %378, %59 : vector<8x128xf32>
    %380 = arith.mulf %377, %377 : vector<8x128xf32>
    %381 = arith.mulf %379, %379 : vector<8x128xf32>
    %382 = arith.addf %380, %381 : vector<8x128xf32>
    %cst_50 = arith.constant dense<0x7F800000> : vector<8xf32>
    %383 = vector.multi_reduction <minimumf>, %382, %cst_50 [1] : vector<8x128xf32> to vector<8xf32>
    %384 = vector.shape_cast %383 : vector<8xf32> to vector<8x1xf32>
    %385 = arith.minimumf %350, %382 : vector<8x128xf32>
    %386 = arith.maximumf %351, %384 : vector<8x1xf32>
    %cst_51 = arith.constant -0.142314836 : f32
    %387 = vector.broadcast %cst_51 : f32 to vector<8x1xf32>
    %388 = arith.mulf %64, %387 : vector<8x1xf32>
    %cst_52 = arith.constant -0.989821434 : f32
    %389 = vector.broadcast %cst_52 : f32 to vector<8x1xf32>
    %390 = arith.mulf %65, %389 : vector<8x1xf32>
    %391 = arith.subf %388, %390 : vector<8x1xf32>
    %cst_53 = arith.constant -0.142314836 : f32
    %392 = vector.broadcast %cst_53 : f32 to vector<8x1xf32>
    %393 = arith.mulf %65, %392 : vector<8x1xf32>
    %cst_54 = arith.constant -0.989821434 : f32
    %394 = vector.broadcast %cst_54 : f32 to vector<8x1xf32>
    %395 = arith.mulf %64, %394 : vector<8x1xf32>
    %396 = arith.addf %393, %395 : vector<8x1xf32>
    %397 = vector.broadcast %67 : vector<1x1xf32> to vector<8x1xf32>
    %398 = arith.mulf %397, %391 : vector<8x1xf32>
    %399 = vector.broadcast %69 : vector<1x1xf32> to vector<8x1xf32>
    %400 = arith.mulf %399, %396 : vector<8x1xf32>
    %401 = arith.subf %398, %400 : vector<8x1xf32>
    %402 = vector.broadcast %1 : f32 to vector<8x1xf32>
    %403 = arith.addf %401, %402 : vector<8x1xf32>
    %404 = vector.broadcast %71 : vector<1x1xf32> to vector<8x1xf32>
    %405 = arith.mulf %404, %391 : vector<8x1xf32>
    %406 = vector.broadcast %73 : vector<1x1xf32> to vector<8x1xf32>
    %407 = arith.mulf %406, %396 : vector<8x1xf32>
    %408 = arith.addf %405, %407 : vector<8x1xf32>
    %409 = vector.broadcast %3 : f32 to vector<8x1xf32>
    %410 = arith.addf %408, %409 : vector<8x1xf32>
    %411 = vector.broadcast %403 : vector<8x1xf32> to vector<8x128xf32>
    %412 = arith.subf %411, %57 : vector<8x128xf32>
    %413 = vector.broadcast %410 : vector<8x1xf32> to vector<8x128xf32>
    %414 = arith.subf %413, %59 : vector<8x128xf32>
    %415 = arith.mulf %412, %412 : vector<8x128xf32>
    %416 = arith.mulf %414, %414 : vector<8x128xf32>
    %417 = arith.addf %415, %416 : vector<8x128xf32>
    %cst_55 = arith.constant dense<0x7F800000> : vector<8xf32>
    %418 = vector.multi_reduction <minimumf>, %417, %cst_55 [1] : vector<8x128xf32> to vector<8xf32>
    %419 = vector.shape_cast %418 : vector<8xf32> to vector<8x1xf32>
    %420 = arith.minimumf %385, %417 : vector<8x128xf32>
    %421 = arith.maximumf %386, %419 : vector<8x1xf32>
    %cst_56 = arith.constant 0.356886208 : f32
    %422 = vector.broadcast %cst_56 : f32 to vector<8x1xf32>
    %423 = arith.mulf %64, %422 : vector<8x1xf32>
    %cst_57 = arith.constant -0.934147834 : f32
    %424 = vector.broadcast %cst_57 : f32 to vector<8x1xf32>
    %425 = arith.mulf %65, %424 : vector<8x1xf32>
    %426 = arith.subf %423, %425 : vector<8x1xf32>
    %cst_58 = arith.constant 0.356886208 : f32
    %427 = vector.broadcast %cst_58 : f32 to vector<8x1xf32>
    %428 = arith.mulf %65, %427 : vector<8x1xf32>
    %cst_59 = arith.constant -0.934147834 : f32
    %429 = vector.broadcast %cst_59 : f32 to vector<8x1xf32>
    %430 = arith.mulf %64, %429 : vector<8x1xf32>
    %431 = arith.addf %428, %430 : vector<8x1xf32>
    %432 = vector.broadcast %67 : vector<1x1xf32> to vector<8x1xf32>
    %433 = arith.mulf %432, %426 : vector<8x1xf32>
    %434 = vector.broadcast %69 : vector<1x1xf32> to vector<8x1xf32>
    %435 = arith.mulf %434, %431 : vector<8x1xf32>
    %436 = arith.subf %433, %435 : vector<8x1xf32>
    %437 = vector.broadcast %1 : f32 to vector<8x1xf32>
    %438 = arith.addf %436, %437 : vector<8x1xf32>
    %439 = vector.broadcast %71 : vector<1x1xf32> to vector<8x1xf32>
    %440 = arith.mulf %439, %426 : vector<8x1xf32>
    %441 = vector.broadcast %73 : vector<1x1xf32> to vector<8x1xf32>
    %442 = arith.mulf %441, %431 : vector<8x1xf32>
    %443 = arith.addf %440, %442 : vector<8x1xf32>
    %444 = vector.broadcast %3 : f32 to vector<8x1xf32>
    %445 = arith.addf %443, %444 : vector<8x1xf32>
    %446 = vector.broadcast %438 : vector<8x1xf32> to vector<8x128xf32>
    %447 = arith.subf %446, %57 : vector<8x128xf32>
    %448 = vector.broadcast %445 : vector<8x1xf32> to vector<8x128xf32>
    %449 = arith.subf %448, %59 : vector<8x128xf32>
    %450 = arith.mulf %447, %447 : vector<8x128xf32>
    %451 = arith.mulf %449, %449 : vector<8x128xf32>
    %452 = arith.addf %450, %451 : vector<8x128xf32>
    %cst_60 = arith.constant dense<0x7F800000> : vector<8xf32>
    %453 = vector.multi_reduction <minimumf>, %452, %cst_60 [1] : vector<8x128xf32> to vector<8xf32>
    %454 = vector.shape_cast %453 : vector<8xf32> to vector<8x1xf32>
    %455 = arith.minimumf %420, %452 : vector<8x128xf32>
    %456 = arith.maximumf %421, %454 : vector<8x1xf32>
    %cst_61 = arith.constant 0.766044437 : f32
    %457 = vector.broadcast %cst_61 : f32 to vector<8x1xf32>
    %458 = arith.mulf %64, %457 : vector<8x1xf32>
    %cst_62 = arith.constant -0.642787635 : f32
    %459 = vector.broadcast %cst_62 : f32 to vector<8x1xf32>
    %460 = arith.mulf %65, %459 : vector<8x1xf32>
    %461 = arith.subf %458, %460 : vector<8x1xf32>
    %cst_63 = arith.constant 0.766044437 : f32
    %462 = vector.broadcast %cst_63 : f32 to vector<8x1xf32>
    %463 = arith.mulf %65, %462 : vector<8x1xf32>
    %cst_64 = arith.constant -0.642787635 : f32
    %464 = vector.broadcast %cst_64 : f32 to vector<8x1xf32>
    %465 = arith.mulf %64, %464 : vector<8x1xf32>
    %466 = arith.addf %463, %465 : vector<8x1xf32>
    %467 = vector.broadcast %67 : vector<1x1xf32> to vector<8x1xf32>
    %468 = arith.mulf %467, %461 : vector<8x1xf32>
    %469 = vector.broadcast %69 : vector<1x1xf32> to vector<8x1xf32>
    %470 = arith.mulf %469, %466 : vector<8x1xf32>
    %471 = arith.subf %468, %470 : vector<8x1xf32>
    %472 = vector.broadcast %1 : f32 to vector<8x1xf32>
    %473 = arith.addf %471, %472 : vector<8x1xf32>
    %474 = vector.broadcast %71 : vector<1x1xf32> to vector<8x1xf32>
    %475 = arith.mulf %474, %461 : vector<8x1xf32>
    %476 = vector.broadcast %73 : vector<1x1xf32> to vector<8x1xf32>
    %477 = arith.mulf %476, %466 : vector<8x1xf32>
    %478 = arith.addf %475, %477 : vector<8x1xf32>
    %479 = vector.broadcast %3 : f32 to vector<8x1xf32>
    %480 = arith.addf %478, %479 : vector<8x1xf32>
    %481 = vector.broadcast %473 : vector<8x1xf32> to vector<8x128xf32>
    %482 = arith.subf %481, %57 : vector<8x128xf32>
    %483 = vector.broadcast %480 : vector<8x1xf32> to vector<8x128xf32>
    %484 = arith.subf %483, %59 : vector<8x128xf32>
    %485 = arith.mulf %482, %482 : vector<8x128xf32>
    %486 = arith.mulf %484, %484 : vector<8x128xf32>
    %487 = arith.addf %485, %486 : vector<8x128xf32>
    %cst_65 = arith.constant dense<0x7F800000> : vector<8xf32>
    %488 = vector.multi_reduction <minimumf>, %487, %cst_65 [1] : vector<8x128xf32> to vector<8xf32>
    %489 = vector.shape_cast %488 : vector<8xf32> to vector<8x1xf32>
    %490 = arith.minimumf %455, %487 : vector<8x128xf32>
    %491 = arith.maximumf %456, %489 : vector<8x1xf32>
    %cst_66 = arith.constant 0.902926564 : f32
    %492 = vector.broadcast %cst_66 : f32 to vector<8x1xf32>
    %493 = arith.mulf %64, %492 : vector<8x1xf32>
    %cst_67 = arith.constant -0.429794908 : f32
    %494 = vector.broadcast %cst_67 : f32 to vector<8x1xf32>
    %495 = arith.mulf %65, %494 : vector<8x1xf32>
    %496 = arith.subf %493, %495 : vector<8x1xf32>
    %cst_68 = arith.constant 0.902926564 : f32
    %497 = vector.broadcast %cst_68 : f32 to vector<8x1xf32>
    %498 = arith.mulf %65, %497 : vector<8x1xf32>
    %cst_69 = arith.constant -0.429794908 : f32
    %499 = vector.broadcast %cst_69 : f32 to vector<8x1xf32>
    %500 = arith.mulf %64, %499 : vector<8x1xf32>
    %501 = arith.addf %498, %500 : vector<8x1xf32>
    %502 = vector.broadcast %67 : vector<1x1xf32> to vector<8x1xf32>
    %503 = arith.mulf %502, %496 : vector<8x1xf32>
    %504 = vector.broadcast %69 : vector<1x1xf32> to vector<8x1xf32>
    %505 = arith.mulf %504, %501 : vector<8x1xf32>
    %506 = arith.subf %503, %505 : vector<8x1xf32>
    %507 = vector.broadcast %1 : f32 to vector<8x1xf32>
    %508 = arith.addf %506, %507 : vector<8x1xf32>
    %509 = vector.broadcast %71 : vector<1x1xf32> to vector<8x1xf32>
    %510 = arith.mulf %509, %496 : vector<8x1xf32>
    %511 = vector.broadcast %73 : vector<1x1xf32> to vector<8x1xf32>
    %512 = arith.mulf %511, %501 : vector<8x1xf32>
    %513 = arith.addf %510, %512 : vector<8x1xf32>
    %514 = vector.broadcast %3 : f32 to vector<8x1xf32>
    %515 = arith.addf %513, %514 : vector<8x1xf32>
    %516 = vector.broadcast %508 : vector<8x1xf32> to vector<8x128xf32>
    %517 = arith.subf %516, %57 : vector<8x128xf32>
    %518 = vector.broadcast %515 : vector<8x1xf32> to vector<8x128xf32>
    %519 = arith.subf %518, %59 : vector<8x128xf32>
    %520 = arith.mulf %517, %517 : vector<8x128xf32>
    %521 = arith.mulf %519, %519 : vector<8x128xf32>
    %522 = arith.addf %520, %521 : vector<8x128xf32>
    %cst_70 = arith.constant dense<0x7F800000> : vector<8xf32>
    %523 = vector.multi_reduction <minimumf>, %522, %cst_70 [1] : vector<8x128xf32> to vector<8xf32>
    %524 = vector.shape_cast %523 : vector<8xf32> to vector<8x1xf32>
    %525 = arith.minimumf %490, %522 : vector<8x128xf32>
    %526 = arith.maximumf %491, %524 : vector<8x1xf32>
    %cst_71 = arith.constant dense<0xFF800000> : vector<1xf32>
    %527 = vector.multi_reduction <maximumf>, %526, %cst_71 [0] : vector<8x1xf32> to vector<1xf32>
    %528 = vector.shape_cast %527 : vector<1xf32> to vector<1x1xf32>
    %cst_72 = arith.constant dense<0x7F800000> : vector<128xf32>
    %529 = vector.multi_reduction <minimumf>, %525, %cst_72 [0] : vector<8x128xf32> to vector<128xf32>
    %530 = vector.shape_cast %529 : vector<128xf32> to vector<1x128xf32>
    %cst_73 = arith.constant dense<0xFF800000> : vector<1xf32>
    %531 = vector.multi_reduction <maximumf>, %530, %cst_73 [1] : vector<1x128xf32> to vector<1xf32>
    %532 = vector.shape_cast %531 : vector<1xf32> to vector<1x1xf32>
    %533 = arith.maximumf %528, %532 : vector<1x1xf32>
    %534 = math.sqrt %533 : vector<1x1xf32>
    %c0_74 = arith.constant 0 : index
    %c0_75 = arith.constant 0 : index
    %c0_76 = arith.constant 0 : index
    %535 = vector.load %arg3[%c0_74, %c0_75, %c0_76] : memref<1x1x1xf32, #tpu.memory_space<vmem>>, vector<1x1x1xf32>
    %536 = vector.shape_cast %535 : vector<1x1x1xf32> to vector<1x1xf32>
    %537 = vector.shape_cast %534 : vector<1x1xf32> to vector<1x1x1xf32>
    tpu.vector_store %arg3[%c0_74, %c0_75, %c0_76], %537 {strides = array<i32>} : memref<1x1x1xf32, #tpu.memory_space<vmem>>, vector<1x1x1xf32>,
    return
  }
  func.func @transform_0(%arg0: i32) -> (i32, i32) {
    %c0_i32 = arith.constant 0 : i32
    %c0_i32_0 = arith.constant 0 : i32
    %c0_i32_1 = arith.constant 0 : i32
    return %c0_i32, %c0_i32_0 : i32, i32
  }
  func.func @transform_1(%arg0: i32) -> (i32, i32) {
    %c0_i32 = arith.constant 0 : i32
    %c0_i32_0 = arith.constant 0 : i32
    %c0_i32_1 = arith.constant 0 : i32
    return %c0_i32, %c0_i32_0 : i32, i32
  }
  func.func @transform_2(%arg0: i32) -> (i32, i32, i32) {
    %c0_i32 = arith.constant 0 : i32
    %c0_i32_0 = arith.constant 0 : i32
    %c0_i32_1 = arith.constant 0 : i32
    return %arg0, %c0_i32, %c0_i32_0 : i32, i32, i32
  }
}

</mosaic_0001>

<llo_original>
// kernel: tpu_custom_call.1
$region0: #{tpu_custom_call.1}
  #allocation0 [shape = 'u32[]', space=smem, size = 0x4, offset = 0x4, fixed_abs, tag = 'smem constant byte address 0x4 - core index']
  #allocation1 [shape = 'u32[144,128]{1,0:T(1,128)}', space=vmem, size = 0x12000, scoped, tag = 'internal scratch']
  %s0 = inlined_call_operand.hbm [shape: f32[1,5], index: 0, kind: input, shape index: {}]
  %s1 = inlined_call_operand.vmem [shape: f32[1,5], index: 1, kind: input, shape index: {}]
  %s2 = inlined_call_operand.hbm [shape: f32[1,1,1], index: 2, kind: output, shape index: {}]
  %s3 = sld [smem:[#allocation0]]
  $region26: #{tpu_custom_call.1} parent=0
    _
  %s5 = ssub.s32 1, %s3
  %s6 = scalar_select 0, %s5, %s3
  $region1: #{tpu_custom_call.1} parent=0
    #allocation2 [shape = 'u8[512]{0}', space=smem, size = 0x200, scoped, tag = 'input window, operand 0, single buffered']
    #allocation3 [shape = 's32[1]{0}', space=sflag, size = 0x4, scoped, tag = 'scoped memory for tpu_custom_call.1']
    #allocation4 [shape = 's32[1]{0}', space=sflag, size = 0x4, scoped, tag = 'scoped memory for tpu_custom_call.1']
    #allocation5 [shape = 's32[1]{0}', space=sflag, size = 0x4, scoped, tag = 'scoped memory for tpu_custom_call.1']
    #allocation6 [shape = 'u8[512]{0}', space=smem, size = 0x200, scoped, tag = 'input window, operand 1, single buffered']
    #allocation7 [shape = 'u8[512]{0}', space=vmem, size = 0x400, scoped, tag = 'output window, operand 0, single buffered']
    %7 = vsyncpa [#allocation4], 0
    %8 = vsyncpa [#allocation5], 0
    %9 = vsyncpa [#allocation3], 0
    // Predicated region
    $region2: #{tpu_custom_call.1} parent=1 // pred_check
      _
    $region3: #{tpu_custom_call.1} parent=1 // pred_check_branch
      %11 = sbr.rel (0) target = $region5
    $region4: #{tpu_custom_call.1} parent=1 // pred_region
      %s13 = ssub.s32 16, 16
      %14 = vsyncadd [#allocation4], %s13
      %17 = dma.hbm_to_smem %s0, 16, [#allocation2], [#allocation4]
    $region5: #{tpu_custom_call.1} parent=1 // pred_fallthru
      _
    // Predicated region
    $region6: #{tpu_custom_call.1} parent=1 // pred_check
      _
    $region7: #{tpu_custom_call.1} parent=1 // pred_check_branch
      %19 = sbr.rel (0) target = $region9
    $region8: #{tpu_custom_call.1} parent=1 // pred_region
      %s21 = ssub.s32 16, 16
      %22 = vsyncadd [#allocation5], %s21
      %s24 = sshll.u32 %s1, 4
      %s25 = int_to_ptr.vmem [resolvable:$true] %s24
      %27 = dma.vmem_to_smem %s25, 16, [#allocation6], [#allocation5]
    $region9: #{tpu_custom_call.1} parent=1 // pred_fallthru
      _
    // Predicated region
    $region10: #{tpu_custom_call.1} parent=1 // pred_check
      _
    $region11: #{tpu_custom_call.1} parent=1 // pred_check_branch
      %29 = sbr.rel (0) target = $region13
    $region12: #{tpu_custom_call.1} parent=1 // pred_region
      %30 = dma.done [#allocation4], 16
    $region13: #{tpu_custom_call.1} parent=1 // pred_fallthru
      _
    // Predicated region
    $region14: #{tpu_custom_call.1} parent=1 // pred_check
      _
    $region15: #{tpu_custom_call.1} parent=1 // pred_check_branch
      %32 = sbr.rel (0) target = $region17
    $region16: #{tpu_custom_call.1} parent=1 // pred_region
      %33 = dma.done [#allocation5], 16
    $region17: #{tpu_custom_call.1} parent=1 // pred_fallthru
      _
    %34 = sfence
    %s35 = smul.u32 0, 128
    %s36 = sld [smem:[#allocation2 + %s35]]
    %s37 = sadd.s32 %s35, 1
    %s38 = sld [smem:[#allocation2 + %s37]]
    %s39 = sadd.s32 %s35, 2
    %s40 = sld [smem:[#allocation2 + %s39]]
    %s41 = sadd.s32 %s35, 3
    %s42 = sld [smem:[#allocation2 + %s41]]
    %s43 = sld [smem:[#allocation6 + %s35]]
    %s44 = sld [smem:[#allocation6 + %s37]]
    %s45 = sld [smem:[#allocation6 + %s39]]
    %s46 = sld [smem:[#allocation6 + %s41]]
    %s47 = sadd.s32 %s35, 4
    %s48 = sld [smem:[#allocation2 + %s47]]
    %v49 = vstv %s48
    %s50 = sld [smem:[#allocation6 + %s47]]
    %v51 = vstv %s50
    %v52 = vand.u32 2147483647, %v49
    %vm53 = vcmp.le.f32.partialorder %v52, 0.7853982
    %vm54 = vcmp.lt.s32.totalorder %v49, 0
    %v55 = vand.u32 %v49, 2139095040
    %v56 = vshrl.u32 %v55, 23
    %v57 = vsub.s32 %v56, 127
    %v58 = vand.u32 2147483647, %v49
    %v59 = vand.u32 %v58, 8388607
    %v60 = vor.u32 %v59, 8388608
    %v61 = vsub.s32 0, %v60
    %v62 = vadd.s32 %v57, 1
    %vm63 = vcmp.gt.s32.totalorder %v62, 0
    %v64 = vsel %vm63, %v62, 0
    %v65 = vshrl.u32 %v64, 5
    %v66 = vand.u32 %v64, 31
    %v67 = vsub.s32 32, %v66
    %v68 = vshrl.u32 683565275, %v67
    %v69 = vshll.u32 683565275, %v66
    %v70 = vshrl.u32 2475754826, %v67
    %v71 = vor.u32 %v69, %v70
    %v72 = vshll.u32 2475754826, %v66
    %v73 = vshrl.u32 2131351028, %v67
    %v74 = vor.u32 %v72, %v73
    %v75 = vshll.u32 2131351028, %v66
    %v76 = vshrl.u32 2102212464, %v67
    %v77 = vor.u32 %v75, %v76
    %v78 = vshll.u32 2102212464, %v66
    %v79 = vshrl.u32 920167782, %v67
    %v80 = vor.u32 %v78, %v79
    %v81 = vshll.u32 920167782, %v66
    %v82 = vshrl.u32 1326507024, %v67
    %v83 = vor.u32 %v81, %v82
    %vm84 = vcmp.lt.s32.totalorder %v65, 1
    %vm85 = vcmp.lt.s32.totalorder %v65, 2
    %vm86 = vcmp.lt.s32.totalorder %v65, 3
    %vm87 = vcmp.lt.s32.totalorder %v65, 4
    %v88 = vsel %vm84, %v68, %v71
    %v89 = vsel %vm87, %v77, 2102212464
    %v90 = vsel %vm86, %v74, %v89
    %v91 = vsel %vm85, %v88, %v90
    %v92 = vsel %vm84, %v71, %v74
    %v93 = vsel %vm87, %v80, 920167782
    %v94 = vsel %vm86, %v77, %v93
    %v95 = vsel %vm85, %v92, %v94
    %v96 = vsel %vm84, %v74, %v77
    %v97 = vsel %vm87, %v83, 1326507024
    %v98 = vsel %vm86, %v80, %v97
    %v99 = vsel %vm85, %v96, %v98
    %v100 = vshll.u32 %v60, 8
    %v101 = vmul.u32.u64.compose %v100, %v99
    %v102 = vextract.low.u32 %v101
    %v103 = vextract.high.u32 %v101
    %v104 = vmul.u32.u64.compose %v100, %v95
    %v105 = vextract.low.u32 %v104
    %v106 = vextract.high.u32 %v104
    %v107 = vmul.u32 %v100, %v91
    %v108 = vadd.s32 %v103, %v105
    %vm109 = vc.u32 %v103, %v105
    %v110 = vadd.s32 %v106, 1
    %v111 = vsel %vm109, %v110, %v106
    %v112 = vadd.s32 %v107, %v111
    %v113 = vadd.s32 %v112, 536870912
    %v114 = vshrl.u32 %v113, 30
    %v115 = vshll.u32 %v114, 30
    %v116 = vsub.s32 %v112, %v115
    %vm117 = vcmp.lt.s32.totalorder %v116, 0
    %v118 = vsub.s32 0, %v116
    %v119 = vsel %vm117, %v118, %v116
    %v120 = vclz %v119
    %v121 = vsub.s32 %v120, 2
    %vm122 = vcmp.gt.s32.totalorder 0, %v121
    %v123 = vsel %vm122, 0, %v121
    %v124 = vsub.s32 32, %v123
    %v125 = vshll.u32 %v116, %v123
    %v126 = vshrl.u32 %v108, %v124
    %v127 = vor.u32 %v125, %v126
    %v128 = vsub.s32 4294967266, %v123
    %v129 = vadd.s32 %v128, 127
    %v130 = vshll.u32 %v129, 23
    %v131 = vor.u32 4788187, %v130
    %v132 = vand.u32 2147483647, %v131
    %v134 = vcvt.s32.f32 %v127
    %v135 = vmul.f32 %v134, %v132
    %v136 = vxor.u32 %v135, 2147483648
    %v137 = vsel %vm54, %v136, %v135
    %v138 = vsub.s32 4, %v114
    %v139 = vsel %vm54, %v138, %v114
    %v140 = vsel %vm53, %v49, %v137
    %v141 = vsel %vm53, 0, %v139
    %v142 = vcosq.f32.pop %v140
    %v143 = vsinq.f32.pop %v140
    %vm144 = vweird.f32 %v49
    %v145 = vand.u32 %v141, 3
    %vm146 = vcmp.lt.s32.totalorder %v145, 2
    %vm147 = vcmp.eq.s32.totalorder %v145, 0
    %v148 = vxor.u32 %v143, 2147483648
    %v149 = vsel %vm147, %v142, %v148
    %vm150 = vcmp.eq.s32.totalorder %v145, 2
    %v151 = vxor.u32 %v142, 2147483648
    %v152 = vsel %vm150, %v151, %v143
    %v153 = vsel %vm146, %v149, %v152
    %v154 = vsel %vm144, nan, %v153
    %v155 = vand.u32 2147483647, %v49
    %vm156 = vcmp.le.f32.partialorder %v155, 0.7853982
    %vm157 = vcmp.lt.s32.totalorder %v49, 0
    %v158 = vand.u32 %v49, 2139095040
    %v159 = vshrl.u32 %v158, 23
    %v160 = vsub.s32 %v159, 127
    %v161 = vand.u32 2147483647, %v49
    %v162 = vand.u32 %v161, 8388607
    %v163 = vor.u32 %v162, 8388608
    %v164 = vsub.s32 0, %v163
    %v165 = vadd.s32 %v160, 1
    %vm166 = vcmp.gt.s32.totalorder %v165, 0
    %v167 = vsel %vm166, %v165, 0
    %v168 = vshrl.u32 %v167, 5
    %v169 = vand.u32 %v167, 31
    %v170 = vsub.s32 32, %v169
    %v171 = vshrl.u32 683565275, %v170
    %v172 = vshll.u32 683565275, %v169
    %v173 = vshrl.u32 2475754826, %v170
    %v174 = vor.u32 %v172, %v173
    %v175 = vshll.u32 2475754826, %v169
    %v176 = vshrl.u32 2131351028, %v170
    %v177 = vor.u32 %v175, %v176
    %v178 = vshll.u32 2131351028, %v169
    %v179 = vshrl.u32 2102212464, %v170
    %v180 = vor.u32 %v178, %v179
    %v181 = vshll.u32 2102212464, %v169
    %v182 = vshrl.u32 920167782, %v170
    %v183 = vor.u32 %v181, %v182
    %v184 = vshll.u32 920167782, %v169
    %v185 = vshrl.u32 1326507024, %v170
    %v186 = vor.u32 %v184, %v185
    %vm187 = vcmp.lt.s32.totalorder %v168, 1
    %vm188 = vcmp.lt.s32.totalorder %v168, 2
    %vm189 = vcmp.lt.s32.totalorder %v168, 3
    %vm190 = vcmp.lt.s32.totalorder %v168, 4
    %v191 = vsel %vm187, %v171, %v174
    %v192 = vsel %vm190, %v180, 2102212464
    %v193 = vsel %vm189, %v177, %v192
    %v194 = vsel %vm188, %v191, %v193
    %v195 = vsel %vm187, %v174, %v177
    %v196 = vsel %vm190, %v183, 920167782
    %v197 = vsel %vm189, %v180, %v196
    %v198 = vsel %vm188, %v195, %v197
    %v199 = vsel %vm187, %v177, %v180
    %v200 = vsel %vm190, %v186, 1326507024
    %v201 = vsel %vm189, %v183, %v200
    %v202 = vsel %vm188, %v199, %v201
    %v203 = vshll.u32 %v163, 8
    %v204 = vmul.u32.u64.compose %v203, %v202
    %v205 = vextract.low.u32 %v204
    %v206 = vextract.high.u32 %v204
    %v207 = vmul.u32.u64.compose %v203, %v198
    %v208 = vextract.low.u32 %v207
    %v209 = vextract.high.u32 %v207
    %v210 = vmul.u32 %v203, %v194
    %v211 = vadd.s32 %v206, %v208
    %vm212 = vc.u32 %v206, %v208
    %v213 = vadd.s32 %v209, 1
    %v214 = vsel %vm212, %v213, %v209
    %v215 = vadd.s32 %v210, %v214
    %v216 = vadd.s32 %v215, 536870912
    %v217 = vshrl.u32 %v216, 30
    %v218 = vshll.u32 %v217, 30
    %v219 = vsub.s32 %v215, %v218
    %vm220 = vcmp.lt.s32.totalorder %v219, 0
    %v221 = vsub.s32 0, %v219
    %v222 = vsel %vm220, %v221, %v219
    %v223 = vclz %v222
    %v224 = vsub.s32 %v223, 2
    %vm225 = vcmp.gt.s32.totalorder 0, %v224
    %v226 = vsel %vm225, 0, %v224
    %v227 = vsub.s32 32, %v226
    %v228 = vshll.u32 %v219, %v226
    %v229 = vshrl.u32 %v211, %v227
    %v230 = vor.u32 %v228, %v229
    %v231 = vsub.s32 4294967266, %v226
    %v232 = vadd.s32 %v231, 127
    %v233 = vshll.u32 %v232, 23
    %v234 = vor.u32 4788187, %v233
    %v235 = vand.u32 2147483647, %v234
    %v237 = vcvt.s32.f32 %v230
    %v238 = vmul.f32 %v237, %v235
    %v239 = vxor.u32 %v238, 2147483648
    %v240 = vsel %vm157, %v239, %v238
    %v241 = vsub.s32 4, %v217
    %v242 = vsel %vm157, %v241, %v217
    %v243 = vsel %vm156, %v49, %v240
    %v244 = vsel %vm156, 0, %v242
    %v245 = vcosq.f32.pop %v243
    %v246 = vsinq.f32.pop %v243
    %vm247 = vweird.f32 %v49
    %v248 = vadd.s32 %v244, 3
    %v249 = vand.u32 %v248, 3
    %vm250 = vcmp.lt.s32.totalorder %v249, 2
    %vm251 = vcmp.eq.s32.totalorder %v249, 0
    %v252 = vxor.u32 %v246, 2147483648
    %v253 = vsel %vm251, %v245, %v252
    %vm254 = vcmp.eq.s32.totalorder %v249, 2
    %v255 = vxor.u32 %v245, 2147483648
    %v256 = vsel %vm254, %v255, %v246
    %v257 = vsel %vm250, %v253, %v256
    %v258 = vsel %vm247, nan, %v257
    %v259 = vand.u32 2147483647, %v51
    %vm260 = vcmp.le.f32.partialorder %v259, 0.7853982
    %vm261 = vcmp.lt.s32.totalorder %v51, 0
    %v262 = vand.u32 %v51, 2139095040
    %v263 = vshrl.u32 %v262, 23
    %v264 = vsub.s32 %v263, 127
    %v265 = vand.u32 2147483647, %v51
    %v266 = vand.u32 %v265, 8388607
    %v267 = vor.u32 %v266, 8388608
    %v268 = vsub.s32 0, %v267
    %v269 = vadd.s32 %v264, 1
    %vm270 = vcmp.gt.s32.totalorder %v269, 0
    %v271 = vsel %vm270, %v269, 0
    %v272 = vshrl.u32 %v271, 5
    %v273 = vand.u32 %v271, 31
    %v274 = vsub.s32 32, %v273
    %v275 = vshrl.u32 683565275, %v274
    %v276 = vshll.u32 683565275, %v273
    %v277 = vshrl.u32 2475754826, %v274
    %v278 = vor.u32 %v276, %v277
    %v279 = vshll.u32 2475754826, %v273
    %v280 = vshrl.u32 2131351028, %v274
    %v281 = vor.u32 %v279, %v280
    %v282 = vshll.u32 2131351028, %v273
    %v283 = vshrl.u32 2102212464, %v274
    %v284 = vor.u32 %v282, %v283
    %v285 = vshll.u32 2102212464, %v273
    %v286 = vshrl.u32 920167782, %v274
    %v287 = vor.u32 %v285, %v286
    %v288 = vshll.u32 920167782, %v273
    %v289 = vshrl.u32 1326507024, %v274
    %v290 = vor.u32 %v288, %v289
    %vm291 = vcmp.lt.s32.totalorder %v272, 1
    %vm292 = vcmp.lt.s32.totalorder %v272, 2
    %vm293 = vcmp.lt.s32.totalorder %v272, 3
    %vm294 = vcmp.lt.s32.totalorder %v272, 4
    %v295 = vsel %vm291, %v275, %v278
    %v296 = vsel %vm294, %v284, 2102212464
    %v297 = vsel %vm293, %v281, %v296
    %v298 = vsel %vm292, %v295, %v297
    %v299 = vsel %vm291, %v278, %v281
    %v300 = vsel %vm294, %v287, 920167782
    %v301 = vsel %vm293, %v284, %v300
    %v302 = vsel %vm292, %v299, %v301
    %v303 = vsel %vm291, %v281, %v284
    %v304 = vsel %vm294, %v290, 1326507024
    %v305 = vsel %vm293, %v287, %v304
    %v306 = vsel %vm292, %v303, %v305
    %v307 = vshll.u32 %v267, 8
    %v308 = vmul.u32.u64.compose %v307, %v306
    %v309 = vextract.low.u32 %v308
    %v310 = vextract.high.u32 %v308
    %v311 = vmul.u32.u64.compose %v307, %v302
    %v312 = vextract.low.u32 %v311
    %v313 = vextract.high.u32 %v311
    %v314 = vmul.u32 %v307, %v298
    %v315 = vadd.s32 %v310, %v312
    %vm316 = vc.u32 %v310, %v312
    %v317 = vadd.s32 %v313, 1
    %v318 = vsel %vm316, %v317, %v313
    %v319 = vadd.s32 %v314, %v318
    %v320 = vadd.s32 %v319, 536870912
    %v321 = vshrl.u32 %v320, 30
    %v322 = vshll.u32 %v321, 30
    %v323 = vsub.s32 %v319, %v322
    %vm324 = vcmp.lt.s32.totalorder %v323, 0
    %v325 = vsub.s32 0, %v323
    %v326 = vsel %vm324, %v325, %v323
    %v327 = vclz %v326
    %v328 = vsub.s32 %v327, 2
    %vm329 = vcmp.gt.s32.totalorder 0, %v328
    %v330 = vsel %vm329, 0, %v328
    %v331 = vsub.s32 32, %v330
    %v332 = vshll.u32 %v323, %v330
    %v333 = vshrl.u32 %v315, %v331
    %v334 = vor.u32 %v332, %v333
    %v335 = vsub.s32 4294967266, %v330
    %v336 = vadd.s32 %v335, 127
    %v337 = vshll.u32 %v336, 23
    %v338 = vor.u32 4788187, %v337
    %v339 = vand.u32 2147483647, %v338
    %v341 = vcvt.s32.f32 %v334
    %v342 = vmul.f32 %v341, %v339
    %v343 = vxor.u32 %v342, 2147483648
    %v344 = vsel %vm261, %v343, %v342
    %v345 = vsub.s32 4, %v321
    %v346 = vsel %vm261, %v345, %v321
    %v347 = vsel %vm260, %v51, %v344
    %v348 = vsel %vm260, 0, %v346
    %v349 = vcosq.f32.pop %v347
    %v350 = vsinq.f32.pop %v347
    %vm351 = vweird.f32 %v51
    %v352 = vand.u32 %v348, 3
    %vm353 = vcmp.lt.s32.totalorder %v352, 2
    %vm354 = vcmp.eq.s32.totalorder %v352, 0
    %v355 = vxor.u32 %v350, 2147483648
    %v356 = vsel %vm354, %v349, %v355
    %vm357 = vcmp.eq.s32.totalorder %v352, 2
    %v358 = vxor.u32 %v349, 2147483648
    %v359 = vsel %vm357, %v358, %v350
    %v360 = vsel %vm353, %v356, %v359
    %v361 = vsel %vm351, nan, %v360
    %v362 = vand.u32 2147483647, %v51
    %vm363 = vcmp.le.f32.partialorder %v362, 0.7853982
    %vm364 = vcmp.lt.s32.totalorder %v51, 0
    %v365 = vand.u32 %v51, 2139095040
    %v366 = vshrl.u32 %v365, 23
    %v367 = vsub.s32 %v366, 127
    %v368 = vand.u32 2147483647, %v51
    %v369 = vand.u32 %v368, 8388607
    %v370 = vor.u32 %v369, 8388608
    %v371 = vsub.s32 0, %v370
    %v372 = vadd.s32 %v367, 1
    %vm373 = vcmp.gt.s32.totalorder %v372, 0
    %v374 = vsel %vm373, %v372, 0
    %v375 = vshrl.u32 %v374, 5
    %v376 = vand.u32 %v374, 31
    %v377 = vsub.s32 32, %v376
    %v378 = vshrl.u32 683565275, %v377
    %v379 = vshll.u32 683565275, %v376
    %v380 = vshrl.u32 2475754826, %v377
    %v381 = vor.u32 %v379, %v380
    %v382 = vshll.u32 2475754826, %v376
    %v383 = vshrl.u32 2131351028, %v377
    %v384 = vor.u32 %v382, %v383
    %v385 = vshll.u32 2131351028, %v376
    %v386 = vshrl.u32 2102212464, %v377
    %v387 = vor.u32 %v385, %v386
    %v388 = vshll.u32 2102212464, %v376
    %v389 = vshrl.u32 920167782, %v377
    %v390 = vor.u32 %v388, %v389
    %v391 = vshll.u32 920167782, %v376
    %v392 = vshrl.u32 1326507024, %v377
    %v393 = vor.u32 %v391, %v392
    %vm394 = vcmp.lt.s32.totalorder %v375, 1
    %vm395 = vcmp.lt.s32.totalorder %v375, 2
    %vm396 = vcmp.lt.s32.totalorder %v375, 3
    %vm397 = vcmp.lt.s32.totalorder %v375, 4
    %v398 = vsel %vm394, %v378, %v381
    %v399 = vsel %vm397, %v387, 2102212464
    %v400 = vsel %vm396, %v384, %v399
    %v401 = vsel %vm395, %v398, %v400
    %v402 = vsel %vm394, %v381, %v384
    %v403 = vsel %vm397, %v390, 920167782
    %v404 = vsel %vm396, %v387, %v403
    %v405 = vsel %vm395, %v402, %v404
    %v406 = vsel %vm394, %v384, %v387
    %v407 = vsel %vm397, %v393, 1326507024
    %v408 = vsel %vm396, %v390, %v407
    %v409 = vsel %vm395, %v406, %v408
    %v410 = vshll.u32 %v370, 8
    %v411 = vmul.u32.u64.compose %v410, %v409
    %v412 = vextract.low.u32 %v411
    %v413 = vextract.high.u32 %v411
    %v414 = vmul.u32.u64.compose %v410, %v405
    %v415 = vextract.low.u32 %v414
    %v416 = vextract.high.u32 %v414
    %v417 = vmul.u32 %v410, %v401
    %v418 = vadd.s32 %v413, %v415
    %vm419 = vc.u32 %v413, %v415
    %v420 = vadd.s32 %v416, 1
    %v421 = vsel %vm419, %v420, %v416
    %v422 = vadd.s32 %v417, %v421
    %v423 = vadd.s32 %v422, 536870912
    %v424 = vshrl.u32 %v423, 30
    %v425 = vshll.u32 %v424, 30
    %v426 = vsub.s32 %v422, %v425
    %vm427 = vcmp.lt.s32.totalorder %v426, 0
    %v428 = vsub.s32 0, %v426
    %v429 = vsel %vm427, %v428, %v426
    %v430 = vclz %v429
    %v431 = vsub.s32 %v430, 2
    %vm432 = vcmp.gt.s32.totalorder 0, %v431
    %v433 = vsel %vm432, 0, %v431
    %v434 = vsub.s32 32, %v433
    %v435 = vshll.u32 %v426, %v433
    %v436 = vshrl.u32 %v418, %v434
    %v437 = vor.u32 %v435, %v436
    %v438 = vsub.s32 4294967266, %v433
    %v439 = vadd.s32 %v438, 127
    %v440 = vshll.u32 %v439, 23
    %v441 = vor.u32 4788187, %v440
    %v442 = vand.u32 2147483647, %v441
    %v444 = vcvt.s32.f32 %v437
    %v445 = vmul.f32 %v444, %v442
    %v446 = vxor.u32 %v445, 2147483648
    %v447 = vsel %vm364, %v446, %v445
    %v448 = vsub.s32 4, %v424
    %v449 = vsel %vm364, %v448, %v424
    %v450 = vsel %vm363, %v51, %v447
    %v451 = vsel %vm363, 0, %v449
    %v452 = vcosq.f32.pop %v450
    %v453 = vsinq.f32.pop %v450
    %vm454 = vweird.f32 %v51
    %v455 = vadd.s32 %v451, 3
    %v456 = vand.u32 %v455, 3
    %vm457 = vcmp.lt.s32.totalorder %v456, 2
    %vm458 = vcmp.eq.s32.totalorder %v456, 0
    %v459 = vxor.u32 %v453, 2147483648
    %v460 = vsel %vm458, %v452, %v459
    %vm461 = vcmp.eq.s32.totalorder %v456, 2
    %v462 = vxor.u32 %v452, 2147483648
    %v463 = vsel %vm461, %v462, %v453
    %v464 = vsel %vm457, %v460, %v463
    %v465 = vsel %vm454, nan, %v464
    %v466 = vlaneseq
    %v467 = vand.u32 %v466, 127
    %vm468 = vcmp.lt.s32.totalorder %v467, 99
    %v469 = vsel %vm468, %v467, 99
    %v470 = vcvt.s32.f32 %v469
    %v471 = vmul.f32 %v470, 0.06346652
    %v472 = vand.u32 2147483647, %v471
    %vm473 = vcmp.le.f32.partialorder %v472, 0.7853982
    %vm474 = vcmp.lt.s32.totalorder %v471, 0
    %v475 = vand.u32 %v471, 2139095040
    %v476 = vshrl.u32 %v475, 23
    %v477 = vsub.s32 %v476, 127
    %v478 = vand.u32 2147483647, %v471
    %v479 = vand.u32 %v478, 8388607
    %v480 = vor.u32 %v479, 8388608
    %v481 = vsub.s32 0, %v480
    %v482 = vadd.s32 %v477, 1
    %vm483 = vcmp.gt.s32.totalorder %v482, 0
    %v484 = vsel %vm483, %v482, 0
    %v485 = vshrl.u32 %v484, 5
    %v486 = vand.u32 %v484, 31
    %v487 = vsub.s32 32, %v486
    %v488 = vshrl.u32 683565275, %v487
    %v489 = vshll.u32 683565275, %v486
    %v490 = vshrl.u32 2475754826, %v487
    %v491 = vor.u32 %v489, %v490
    %v492 = vshll.u32 2475754826, %v486
    %v493 = vshrl.u32 2131351028, %v487
    %v494 = vor.u32 %v492, %v493
    %v495 = vshll.u32 2131351028, %v486
    %v496 = vshrl.u32 2102212464, %v487
    %v497 = vor.u32 %v495, %v496
    %v498 = vshll.u32 2102212464, %v486
    %v499 = vshrl.u32 920167782, %v487
    %v500 = vor.u32 %v498, %v499
    %v501 = vshll.u32 920167782, %v486
    %v502 = vshrl.u32 1326507024, %v487
    %v503 = vor.u32 %v501, %v502
    %vm504 = vcmp.lt.s32.totalorder %v485, 1
    %vm505 = vcmp.lt.s32.totalorder %v485, 2
    %vm506 = vcmp.lt.s32.totalorder %v485, 3
    %vm507 = vcmp.lt.s32.totalorder %v485, 4
    %v508 = vsel %vm504, %v488, %v491
    %v509 = vsel %vm507, %v497, 2102212464
    %v510 = vsel %vm506, %v494, %v509
    %v511 = vsel %vm505, %v508, %v510
    %v512 = vsel %vm504, %v491, %v494
    %v513 = vsel %vm507, %v500, 920167782
    %v514 = vsel %vm506, %v497, %v513
    %v515 = vsel %vm505, %v512, %v514
    %v516 = vsel %vm504, %v494, %v497
    %v517 = vsel %vm507, %v503, 1326507024
    %v518 = vsel %vm506, %v500, %v517
    %v519 = vsel %vm505, %v516, %v518
    %v520 = vshll.u32 %v480, 8
    %v521 = vmul.u32.u64.compose %v520, %v519
    %v522 = vextract.low.u32 %v521
    %v523 = vextract.high.u32 %v521
    %v524 = vmul.u32.u64.compose %v520, %v515
    %v525 = vextract.low.u32 %v524
    %v526 = vextract.high.u32 %v524
    %v527 = vmul.u32 %v520, %v511
    %v528 = vadd.s32 %v523, %v525
    %vm529 = vc.u32 %v523, %v525
    %v530 = vadd.s32 %v526, 1
    %v531 = vsel %vm529, %v530, %v526
    %v532 = vadd.s32 %v527, %v531
    %v533 = vadd.s32 %v532, 536870912
    %v534 = vshrl.u32 %v533, 30
    %v535 = vshll.u32 %v534, 30
    %v536 = vsub.s32 %v532, %v535
    %vm537 = vcmp.lt.s32.totalorder %v536, 0
    %v538 = vsub.s32 0, %v536
    %v539 = vsel %vm537, %v538, %v536
    %v540 = vclz %v539
    %v541 = vsub.s32 %v540, 2
    %vm542 = vcmp.gt.s32.totalorder 0, %v541
    %v543 = vsel %vm542, 0, %v541
    %v544 = vsub.s32 32, %v543
    %v545 = vshll.u32 %v536, %v543
    %v546 = vshrl.u32 %v528, %v544
    %v547 = vor.u32 %v545, %v546
    %v548 = vsub.s32 4294967266, %v543
    %v549 = vadd.s32 %v548, 127
    %v550 = vshll.u32 %v549, 23
    %v551 = vor.u32 4788187, %v550
    %v552 = vand.u32 2147483647, %v551
    %v554 = vcvt.s32.f32 %v547
    %v555 = vmul.f32 %v554, %v552
    %v556 = vxor.u32 %v555, 2147483648
    %v557 = vsel %vm474, %v556, %v555
    %v558 = vsub.s32 4, %v534
    %v559 = vsel %vm474, %v558, %v534
    %v560 = vsel %vm473, %v471, %v557
    %v561 = vsel %vm473, 0, %v559
    %v562 = vcosq.f32.pop %v560
    %v563 = vsinq.f32.pop %v560
    %vm564 = vweird.f32 %v471
    %v565 = vand.u32 %v561, 3
    %vm566 = vcmp.lt.s32.totalorder %v565, 2
    %vm567 = vcmp.eq.s32.totalorder %v565, 0
    %v568 = vxor.u32 %v563, 2147483648
    %v569 = vsel %vm567, %v562, %v568
    %vm570 = vcmp.eq.s32.totalorder %v565, 2
    %v571 = vxor.u32 %v562, 2147483648
    %v572 = vsel %vm570, %v571, %v563
    %v573 = vsel %vm566, %v569, %v572
    %v574 = vsel %vm564, nan, %v573
    %v575 = vand.u32 2147483647, %v471
    %vm576 = vcmp.le.f32.partialorder %v575, 0.7853982
    %vm577 = vcmp.lt.s32.totalorder %v471, 0
    %v578 = vand.u32 %v471, 2139095040
    %v579 = vshrl.u32 %v578, 23
    %v580 = vsub.s32 %v579, 127
    %v581 = vand.u32 2147483647, %v471
    %v582 = vand.u32 %v581, 8388607
    %v583 = vor.u32 %v582, 8388608
    %v584 = vsub.s32 0, %v583
    %v585 = vadd.s32 %v580, 1
    %vm586 = vcmp.gt.s32.totalorder %v585, 0
    %v587 = vsel %vm586, %v585, 0
    %v588 = vshrl.u32 %v587, 5
    %v589 = vand.u32 %v587, 31
    %v590 = vsub.s32 32, %v589
    %v591 = vshrl.u32 683565275, %v590
    %v592 = vshll.u32 683565275, %v589
    %v593 = vshrl.u32 2475754826, %v590
    %v594 = vor.u32 %v592, %v593
    %v595 = vshll.u32 2475754826, %v589
    %v596 = vshrl.u32 2131351028, %v590
    %v597 = vor.u32 %v595, %v596
    %v598 = vshll.u32 2131351028, %v589
    %v599 = vshrl.u32 2102212464, %v590
    %v600 = vor.u32 %v598, %v599
    %v601 = vshll.u32 2102212464, %v589
    %v602 = vshrl.u32 920167782, %v590
    %v603 = vor.u32 %v601, %v602
    %v604 = vshll.u32 920167782, %v589
    %v605 = vshrl.u32 1326507024, %v590
    %v606 = vor.u32 %v604, %v605
    %vm607 = vcmp.lt.s32.totalorder %v588, 1
    %vm608 = vcmp.lt.s32.totalorder %v588, 2
    %vm609 = vcmp.lt.s32.totalorder %v588, 3
    %vm610 = vcmp.lt.s32.totalorder %v588, 4
    %v611 = vsel %vm607, %v591, %v594
    %v612 = vsel %vm610, %v600, 2102212464
    %v613 = vsel %vm609, %v597, %v612
    %v614 = vsel %vm608, %v611, %v613
    %v615 = vsel %vm607, %v594, %v597
    %v616 = vsel %vm610, %v603, 920167782
    %v617 = vsel %vm609, %v600, %v616
    %v618 = vsel %vm608, %v615, %v617
    %v619 = vsel %vm607, %v597, %v600
    %v620 = vsel %vm610, %v606, 1326507024
    %v621 = vsel %vm609, %v603, %v620
    %v622 = vsel %vm608, %v619, %v621
    %v623 = vshll.u32 %v583, 8
    %v624 = vmul.u32.u64.compose %v623, %v622
    %v625 = vextract.low.u32 %v624
    %v626 = vextract.high.u32 %v624
    %v627 = vmul.u32.u64.compose %v623, %v618
    %v628 = vextract.low.u32 %v627
    %v629 = vextract.high.u32 %v627
    %v630 = vmul.u32 %v623, %v614
    %v631 = vadd.s32 %v626, %v628
    %vm632 = vc.u32 %v626, %v628
    %v633 = vadd.s32 %v629, 1
    %v634 = vsel %vm632, %v633, %v629
    %v635 = vadd.s32 %v630, %v634
    %v636 = vadd.s32 %v635, 536870912
    %v637 = vshrl.u32 %v636, 30
    %v638 = vshll.u32 %v637, 30
    %v639 = vsub.s32 %v635, %v638
    %vm640 = vcmp.lt.s32.totalorder %v639, 0
    %v641 = vsub.s32 0, %v639
    %v642 = vsel %vm640, %v641, %v639
    %v643 = vclz %v642
    %v644 = vsub.s32 %v643, 2
    %vm645 = vcmp.gt.s32.totalorder 0, %v644
    %v646 = vsel %vm645, 0, %v644
    %v647 = vsub.s32 32, %v646
    %v648 = vshll.u32 %v639, %v646
    %v649 = vshrl.u32 %v631, %v647
    %v650 = vor.u32 %v648, %v649
    %v651 = vsub.s32 4294967266, %v646
    %v652 = vadd.s32 %v651, 127
    %v653 = vshll.u32 %v652, 23
    %v654 = vor.u32 4788187, %v653
    %v655 = vand.u32 2147483647, %v654
    %v657 = vcvt.s32.f32 %v650
    %v658 = vmul.f32 %v657, %v655
    %v659 = vxor.u32 %v658, 2147483648
    %v660 = vsel %vm577, %v659, %v658
    %v661 = vsub.s32 4, %v637
    %v662 = vsel %vm577, %v661, %v637
    %v663 = vsel %vm576, %v471, %v660
    %v664 = vsel %vm576, 0, %v662
    %v665 = vcosq.f32.pop %v663
    %v666 = vsinq.f32.pop %v663
    %vm667 = vweird.f32 %v471
    %v668 = vadd.s32 %v664, 3
    %v669 = vand.u32 %v668, 3
    %vm670 = vcmp.lt.s32.totalorder %v669, 2
    %vm671 = vcmp.eq.s32.totalorder %v669, 0
    %v672 = vxor.u32 %v666, 2147483648
    %v673 = vsel %vm671, %v665, %v672
    %vm674 = vcmp.eq.s32.totalorder %v669, 2
    %v675 = vxor.u32 %v665, 2147483648
    %v676 = vsel %vm674, %v675, %v666
    %v677 = vsel %vm670, %v673, %v676
    %v678 = vsel %vm667, nan, %v677
    %v679 = vstv %s45
    %v680 = vmul.f32 %v361, %v679
    %v681 = vmul.f32 %v680, %v574
    %v682 = vstv %s46
    %v683 = vmul.f32 %v465, %v682
    %v684 = vmul.f32 %v683, %v678
    %v685 = vsub.f32 %v681, %v684
    %v686 = vstv %s43
    %v687 = vadd.f32 %v685, %v686
    %v688 = vmul.f32 %v465, %v679
    %v689 = vmul.f32 %v688, %v574
    %v690 = vmul.f32 %v361, %v682
    %v691 = vmul.f32 %v690, %v678
    %v692 = vadd.f32 %v689, %v691
    %v693 = vstv %s44
    %v694 = vadd.f32 %v692, %v693
    %v695 = vlaneseq
    %v696 = vshrl.u32 %v695, 7
    %v697 = vcvt.s32.f32 %v696
    %v698 = vmul.f32 %v697, 0.06346652
    %v699 = vand.u32 2147483647, %v698
    %vm700 = vcmp.le.f32.partialorder %v699, 0.7853982
    %vm701 = vcmp.lt.s32.totalorder %v698, 0
    %v702 = vand.u32 %v698, 2139095040
    %v703 = vshrl.u32 %v702, 23
    %v704 = vsub.s32 %v703, 127
    %v705 = vand.u32 2147483647, %v698
    %v706 = vand.u32 %v705, 8388607
    %v707 = vor.u32 %v706, 8388608
    %v708 = vsub.s32 0, %v707
    %v709 = vadd.s32 %v704, 1
    %vm710 = vcmp.gt.s32.totalorder %v709, 0
    %v711 = vsel %vm710, %v709, 0
    %v712 = vshrl.u32 %v711, 5
    %v713 = vand.u32 %v711, 31
    %v714 = vsub.s32 32, %v713
    %v715 = vshrl.u32 683565275, %v714
    %v716 = vshll.u32 683565275, %v713
    %v717 = vshrl.u32 2475754826, %v714
    %v718 = vor.u32 %v716, %v717
    %v719 = vshll.u32 2475754826, %v713
    %v720 = vshrl.u32 2131351028, %v714
    %v721 = vor.u32 %v719, %v720
    %v722 = vshll.u32 2131351028, %v713
    %v723 = vshrl.u32 2102212464, %v714
    %v724 = vor.u32 %v722, %v723
    %v725 = vshll.u32 2102212464, %v713
    %v726 = vshrl.u32 920167782, %v714
    %v727 = vor.u32 %v725, %v726
    %v728 = vshll.u32 920167782, %v713
    %v729 = vshrl.u32 1326507024, %v714
    %v730 = vor.u32 %v728, %v729
    %vm731 = vcmp.lt.s32.totalorder %v712, 1
    %vm732 = vcmp.lt.s32.totalorder %v712, 2
    %vm733 = vcmp.lt.s32.totalorder %v712, 3
    %vm734 = vcmp.lt.s32.totalorder %v712, 4
    %v735 = vsel %vm731, %v715, %v718
    %v736 = vsel %vm734, %v724, 2102212464
    %v737 = vsel %vm733, %v721, %v736
    %v738 = vsel %vm732, %v735, %v737
    %v739 = vsel %vm731, %v718, %v721
    %v740 = vsel %vm734, %v727, 920167782
    %v741 = vsel %vm733, %v724, %v740
    %v742 = vsel %vm732, %v739, %v741
    %v743 = vsel %vm731, %v721, %v724
    %v744 = vsel %vm734, %v730, 1326507024
    %v745 = vsel %vm733, %v727, %v744
    %v746 = vsel %vm732, %v743, %v745
    %v747 = vshll.u32 %v707, 8
    %v748 = vmul.u32.u64.compose %v747, %v746
    %v749 = vextract.low.u32 %v748
    %v750 = vextract.high.u32 %v748
    %v751 = vmul.u32.u64.compose %v747, %v742
    %v752 = vextract.low.u32 %v751
    %v753 = vextract.high.u32 %v751
    %v754 = vmul.u32 %v747, %v738
    %v755 = vadd.s32 %v750, %v752
    %vm756 = vc.u32 %v750, %v752
    %v757 = vadd.s32 %v753, 1
    %v758 = vsel %vm756, %v757, %v753
    %v759 = vadd.s32 %v754, %v758
    %v760 = vadd.s32 %v759, 536870912
    %v761 = vshrl.u32 %v760, 30
    %v762 = vshll.u32 %v761, 30
    %v763 = vsub.s32 %v759, %v762
    %vm764 = vcmp.lt.s32.totalorder %v763, 0
    %v765 = vsub.s32 0, %v763
    %v766 = vsel %vm764, %v765, %v763
    %v767 = vclz %v766
    %v768 = vsub.s32 %v767, 2
    %vm769 = vcmp.gt.s32.totalorder 0, %v768
    %v770 = vsel %vm769, 0, %v768
    %v771 = vsub.s32 32, %v770
    %v772 = vshll.u32 %v763, %v770
    %v773 = vshrl.u32 %v755, %v771
    %v774 = vor.u32 %v772, %v773
    %v775 = vsub.s32 4294967266, %v770
    %v776 = vadd.s32 %v775, 127
    %v777 = vshll.u32 %v776, 23
    %v778 = vor.u32 4788187, %v777
    %v779 = vand.u32 2147483647, %v778
    %v781 = vcvt.s32.f32 %v774
    %v782 = vmul.f32 %v781, %v779
    %v783 = vxor.u32 %v782, 2147483648
    %v784 = vsel %vm701, %v783, %v782
    %v785 = vsub.s32 4, %v761
    %v786 = vsel %vm701, %v785, %v761
    %v787 = vsel %vm700, %v698, %v784
    %v788 = vsel %vm700, 0, %v786
    %v789 = vcosq.f32.pop %v787
    %v790 = vsinq.f32.pop %v787
    %vm791 = vweird.f32 %v698
    %v792 = vand.u32 %v788, 3
    %vm793 = vcmp.lt.s32.totalorder %v792, 2
    %vm794 = vcmp.eq.s32.totalorder %v792, 0
    %v795 = vxor.u32 %v790, 2147483648
    %v796 = vsel %vm794, %v789, %v795
    %vm797 = vcmp.eq.s32.totalorder %v792, 2
    %v798 = vxor.u32 %v789, 2147483648
    %v799 = vsel %vm797, %v798, %v790
    %v800 = vsel %vm793, %v796, %v799
    %v801 = vsel %vm791, nan, %v800
    %v802 = vand.u32 2147483647, %v698
    %vm803 = vcmp.le.f32.partialorder %v802, 0.7853982
    %vm804 = vcmp.lt.s32.totalorder %v698, 0
    %v805 = vand.u32 %v698, 2139095040
    %v806 = vshrl.u32 %v805, 23
    %v807 = vsub.s32 %v806, 127
    %v808 = vand.u32 2147483647, %v698
    %v809 = vand.u32 %v808, 8388607
    %v810 = vor.u32 %v809, 8388608
    %v811 = vsub.s32 0, %v810
    %v812 = vadd.s32 %v807, 1
    %vm813 = vcmp.gt.s32.totalorder %v812, 0
    %v814 = vsel %vm813, %v812, 0
    %v815 = vshrl.u32 %v814, 5
    %v816 = vand.u32 %v814, 31
    %v817 = vsub.s32 32, %v816
    %v818 = vshrl.u32 683565275, %v817
    %v819 = vshll.u32 683565275, %v816
    %v820 = vshrl.u32 2475754826, %v817
    %v821 = vor.u32 %v819, %v820
    %v822 = vshll.u32 2475754826, %v816
    %v823 = vshrl.u32 2131351028, %v817
    %v824 = vor.u32 %v822, %v823
    %v825 = vshll.u32 2131351028, %v816
    %v826 = vshrl.u32 2102212464, %v817
    %v827 = vor.u32 %v825, %v826
    %v828 = vshll.u32 2102212464, %v816
    %v829 = vshrl.u32 920167782, %v817
    %v830 = vor.u32 %v828, %v829
    %v831 = vshll.u32 920167782, %v816
    %v832 = vshrl.u32 1326507024, %v817
    %v833 = vor.u32 %v831, %v832
    %vm834 = vcmp.lt.s32.totalorder %v815, 1
    %vm835 = vcmp.lt.s32.totalorder %v815, 2
    %vm836 = vcmp.lt.s32.totalorder %v815, 3
    %vm837 = vcmp.lt.s32.totalorder %v815, 4
    %v838 = vsel %vm834, %v818, %v821
    %v839 = vsel %vm837, %v827, 2102212464
    %v840 = vsel %vm836, %v824, %v839
    %v841 = vsel %vm835, %v838, %v840
    %v842 = vsel %vm834, %v821, %v824
    %v843 = vsel %vm837, %v830, 920167782
    %v844 = vsel %vm836, %v827, %v843
    %v845 = vsel %vm835, %v842, %v844
    %v846 = vsel %vm834, %v824, %v827
    %v847 = vsel %vm837, %v833, 1326507024
    %v848 = vsel %vm836, %v830, %v847
    %v849 = vsel %vm835, %v846, %v848
    %v850 = vshll.u32 %v810, 8
    %v851 = vmul.u32.u64.compose %v850, %v849
    %v852 = vextract.low.u32 %v851
    %v853 = vextract.high.u32 %v851
    %v854 = vmul.u32.u64.compose %v850, %v845
    %v855 = vextract.low.u32 %v854
    %v856 = vextract.high.u32 %v854
    %v857 = vmul.u32 %v850, %v841
    %v858 = vadd.s32 %v853, %v855
    %vm859 = vc.u32 %v853, %v855
    %v860 = vadd.s32 %v856, 1
    %v861 = vsel %vm859, %v860, %v856
    %v862 = vadd.s32 %v857, %v861
    %v863 = vadd.s32 %v862, 536870912
    %v864 = vshrl.u32 %v863, 30
    %v865 = vshll.u32 %v864, 30
    %v866 = vsub.s32 %v862, %v865
    %vm867 = vcmp.lt.s32.totalorder %v866, 0
    %v868 = vsub.s32 0, %v866
    %v869 = vsel %vm867, %v868, %v866
    %v870 = vclz %v869
    %v871 = vsub.s32 %v870, 2
    %vm872 = vcmp.gt.s32.totalorder 0, %v871
    %v873 = vsel %vm872, 0, %v871
    %v874 = vsub.s32 32, %v873
    %v875 = vshll.u32 %v866, %v873
    %v876 = vshrl.u32 %v858, %v874
    %v877 = vor.u32 %v875, %v876
    %v878 = vsub.s32 4294967266, %v873
    %v879 = vadd.s32 %v878, 127
    %v880 = vshll.u32 %v879, 23
    %v881 = vor.u32 4788187, %v880
    %v882 = vand.u32 2147483647, %v881
    %v884 = vcvt.s32.f32 %v877
    %v885 = vmul.f32 %v884, %v882
    %v886 = vxor.u32 %v885, 2147483648
    %v887 = vsel %vm804, %v886, %v885
    %v888 = vsub.s32 4, %v864
    %v889 = vsel %vm804, %v888, %v864
    %v890 = vsel %vm803, %v698, %v887
    %v891 = vsel %vm803, 0, %v889
    %v892 = vcosq.f32.pop %v890
    %v893 = vsinq.f32.pop %v890
    %vm894 = vweird.f32 %v698
    %v895 = vadd.s32 %v891, 3
    %v896 = vand.u32 %v895, 3
    %vm897 = vcmp.lt.s32.totalorder %v896, 2
    %vm898 = vcmp.eq.s32.totalorder %v896, 0
    %v899 = vxor.u32 %v893, 2147483648
    %v900 = vsel %vm898, %v892, %v899
    %vm901 = vcmp.eq.s32.totalorder %v896, 2
    %v902 = vxor.u32 %v892, 2147483648
    %v903 = vsel %vm901, %v902, %v893
    %v904 = vsel %vm897, %v900, %v903
    %v905 = vsel %vm894, nan, %v904
    %v906 = vstv %s40
    %v907 = vmul.f32 %v154, %v906
    %v908 = vstv %s42
    %v909 = vmul.f32 %v258, %v908
    %v910 = vmul.f32 %v258, %v906
    %v911 = vmul.f32 %v154, %v908
    %v912 = vmul.f32 %v905, 0.0
    %v913 = vsub.f32 %v801, %v912
    %v914 = vmul.f32 %v801, 0.0
    %v915 = vadd.f32 %v905, %v914
    %v916 = vmul.f32 %v907, %v913
    %v917 = vmul.f32 %v909, %v915
    %v918 = vsub.f32 %v916, %v917
    %v919 = vstv %s36
    %v920 = vadd.f32 %v918, %v919
    %v921 = vmul.f32 %v910, %v913
    %v922 = vmul.f32 %v911, %v915
    %v923 = vadd.f32 %v921, %v922
    %v924 = vstv %s38
    %v925 = vadd.f32 %v923, %v924
    %v926 = vsub.f32 %v920, %v687
    %v927 = vsub.f32 %v925, %v694
    %v928 = vmul.f32 %v926, %v926
    %v929 = vmul.f32 %v927, %v927
    %v930 = vadd.f32 %v928, %v929
    %931 = vmin.xlane.f32.xlu0 %v930
    %v932 = vpop.xlane.xlu0 %931
    %v933 = vmul.f32 %v801, 0.8738494
    %v934 = vmul.f32 %v905, 0.48619673
    %v935 = vsub.f32 %v933, %v934
    %v936 = vmul.f32 %v905, 0.8738494
    %v937 = vmul.f32 %v801, 0.48619673
    %v938 = vadd.f32 %v936, %v937
    %v939 = vmul.f32 %v907, %v935
    %v940 = vmul.f32 %v909, %v938
    %v941 = vsub.f32 %v939, %v940
    %v942 = vadd.f32 %v941, %v919
    %v943 = vmul.f32 %v910, %v935
    %v944 = vmul.f32 %v911, %v938
    %v945 = vadd.f32 %v943, %v944
    %v946 = vadd.f32 %v945, %v924
    %v947 = vsub.f32 %v942, %v687
    %v948 = vsub.f32 %v946, %v694
    %v949 = vmul.f32 %v947, %v947
    %v950 = vmul.f32 %v948, %v948
    %v951 = vadd.f32 %v949, %v950
    %952 = vmin.xlane.f32.xlu0 %v951
    %v953 = vpop.xlane.xlu0 %952
    %v954 = vmin.f32 %v930, %v951
    %v955 = vmax.f32 %v932, %v953
    %v956 = vmul.f32 %v801, 0.5272255
    %v957 = vmul.f32 %v905, 0.8497254
    %v958 = vsub.f32 %v956, %v957
    %v959 = vmul.f32 %v905, 0.5272255
    %v960 = vmul.f32 %v801, 0.8497254
    %v961 = vadd.f32 %v959, %v960
    %v962 = vmul.f32 %v907, %v958
    %v963 = vmul.f32 %v909, %v961
    %v964 = vsub.f32 %v962, %v963
    %v965 = vadd.f32 %v964, %v919
    %v966 = vmul.f32 %v910, %v958
    %v967 = vmul.f32 %v911, %v961
    %v968 = vadd.f32 %v966, %v967
    %v969 = vadd.f32 %v968, %v924
    %v970 = vsub.f32 %v965, %v687
    %v971 = vsub.f32 %v969, %v694
    %v972 = vmul.f32 %v970, %v970
    %v973 = vmul.f32 %v971, %v971
    %v974 = vadd.f32 %v972, %v973
    %975 = vmin.xlane.f32.xlu0 %v974
    %v976 = vpop.xlane.xlu0 %975
    %v977 = vmin.f32 %v954, %v974
    %v978 = vmax.f32 %v955, %v976
    %v979 = vmul.f32 %v801, 0.047581915
    %v980 = vmul.f32 %v905, 0.99886733
    %v981 = vsub.f32 %v979, %v980
    %v982 = vmul.f32 %v905, 0.047581915
    %v983 = vmul.f32 %v801, 0.99886733
    %v984 = vadd.f32 %v982, %v983
    %v985 = vmul.f32 %v907, %v981
    %v986 = vmul.f32 %v909, %v984
    %v987 = vsub.f32 %v985, %v986
    %v988 = vadd.f32 %v987, %v919
    %v989 = vmul.f32 %v910, %v981
    %v990 = vmul.f32 %v911, %v984
    %v991 = vadd.f32 %v989, %v990
    %v992 = vadd.f32 %v991, %v924
    %v993 = vsub.f32 %v988, %v687
    %v994 = vsub.f32 %v992, %v694
    %v995 = vmul.f32 %v993, %v993
    %v996 = vmul.f32 %v994, %v994
    %v997 = vadd.f32 %v995, %v996
    %998 = vmin.xlane.f32.xlu0 %v997
    %v999 = vpop.xlane.xlu0 %998
    %v1000 = vmin.f32 %v977, %v997
    %v1001 = vmax.f32 %v978, %v999
    %v1002 = vmul.f32 %v801, -0.4440666
    %v1003 = vmul.f32 %v905, 0.89599377
    %v1004 = vsub.f32 %v1002, %v1003
    %v1005 = vmul.f32 %v905, -0.4440666
    %v1006 = vmul.f32 %v801, 0.89599377
    %v1007 = vadd.f32 %v1005, %v1006
    %v1008 = vmul.f32 %v907, %v1004
    %v1009 = vmul.f32 %v909, %v1007
    %v1010 = vsub.f32 %v1008, %v1009
    %v1011 = vadd.f32 %v1010, %v919
    %v1012 = vmul.f32 %v910, %v1004
    %v1013 = vmul.f32 %v911, %v1007
    %v1014 = vadd.f32 %v1012, %v1013
    %v1015 = vadd.f32 %v1014, %v924
    %v1016 = vsub.f32 %v1011, %v687
    %v1017 = vsub.f32 %v1015, %v694
    %v1018 = vmul.f32 %v1016, %v1016
    %v1019 = vmul.f32 %v1017, %v1017
    %v1020 = vadd.f32 %v1018, %v1019
    %1021 = vmin.xlane.f32.xlu0 %v1020
    %v1022 = vpop.xlane.xlu0 %1021
    %v1023 = vmin.f32 %v1000, %v1020
    %v1024 = vmax.f32 %v1001, %v1022
    %v1025 = vmul.f32 %v801, -0.8236766
    %v1026 = vmul.f32 %v905, 0.5670599
    %v1027 = vsub.f32 %v1025, %v1026
    %v1028 = vmul.f32 %v905, -0.8236766
    %v1029 = vmul.f32 %v801, 0.5670599
    %v1030 = vadd.f32 %v1028, %v1029
    %v1031 = vmul.f32 %v907, %v1027
    %v1032 = vmul.f32 %v909, %v1030
    %v1033 = vsub.f32 %v1031, %v1032
    %v1034 = vadd.f32 %v1033, %v919
    %v1035 = vmul.f32 %v910, %v1027
    %v1036 = vmul.f32 %v911, %v1030
    %v1037 = vadd.f32 %v1035, %v1036
    %v1038 = vadd.f32 %v1037, %v924
    %v1039 = vsub.f32 %v1034, %v687
    %v1040 = vsub.f32 %v1038, %v694
    %v1041 = vmul.f32 %v1039, %v1039
    %v1042 = vmul.f32 %v1040, %v1040
    %v1043 = vadd.f32 %v1041, %v1042
    %1044 = vmin.xlane.f32.xlu0 %v1043
    %v1045 = vpop.xlane.xlu0 %1044
    %v1046 = vmin.f32 %v1023, %v1043
    %v1047 = vmax.f32 %v1024, %v1045
    %v1048 = vmul.f32 %v801, -0.9954719
    %v1049 = vmul.f32 %v905, 0.09505604
    %v1050 = vsub.f32 %v1048, %v1049
    %v1051 = vmul.f32 %v905, -0.9954719
    %v1052 = vmul.f32 %v801, 0.09505604
    %v1053 = vadd.f32 %v1051, %v1052
    %v1054 = vmul.f32 %v907, %v1050
    %v1055 = vmul.f32 %v909, %v1053
    %v1056 = vsub.f32 %v1054, %v1055
    %v1057 = vadd.f32 %v1056, %v919
    %v1058 = vmul.f32 %v910, %v1050
    %v1059 = vmul.f32 %v911, %v1053
    %v1060 = vadd.f32 %v1058, %v1059
    %v1061 = vadd.f32 %v1060, %v924
    %v1062 = vsub.f32 %v1057, %v687
    %v1063 = vsub.f32 %v1061, %v694
    %v1064 = vmul.f32 %v1062, %v1062
    %v1065 = vmul.f32 %v1063, %v1063
    %v1066 = vadd.f32 %v1064, %v1065
    %1067 = vmin.xlane.f32.xlu0 %v1066
    %v1068 = vpop.xlane.xlu0 %1067
    %v1069 = vmin.f32 %v1046, %v1066
    %v1070 = vmax.f32 %v1047, %v1068
    %v1071 = vmul.f32 %v801, -0.9161084
    %v1072 = vmul.f32 %v905, -0.40093052
    %v1073 = vsub.f32 %v1071, %v1072
    %v1074 = vmul.f32 %v905, -0.9161084
    %v1075 = vmul.f32 %v801, -0.40093052
    %v1076 = vadd.f32 %v1074, %v1075
    %v1077 = vmul.f32 %v907, %v1073
    %v1078 = vmul.f32 %v909, %v1076
    %v1079 = vsub.f32 %v1077, %v1078
    %v1080 = vadd.f32 %v1079, %v919
    %v1081 = vmul.f32 %v910, %v1073
    %v1082 = vmul.f32 %v911, %v1076
    %v1083 = vadd.f32 %v1081, %v1082
    %v1084 = vadd.f32 %v1083, %v924
    %v1085 = vsub.f32 %v1080, %v687
    %v1086 = vsub.f32 %v1084, %v694
    %v1087 = vmul.f32 %v1085, %v1085
    %v1088 = vmul.f32 %v1086, %v1086
    %v1089 = vadd.f32 %v1087, %v1088
    %1090 = vmin.xlane.f32.xlu0 %v1089
    %v1091 = vpop.xlane.xlu0 %1090
    %v1092 = vmin.f32 %v1069, %v1089
    %v1093 = vmax.f32 %v1070, %v1091
    %v1094 = vmul.f32 %v801, -0.6056097
    %v1095 = vmul.f32 %v905, -0.7957618
    %v1096 = vsub.f32 %v1094, %v1095
    %v1097 = vmul.f32 %v905, -0.6056097
    %v1098 = vmul.f32 %v801, -0.7957618
    %v1099 = vadd.f32 %v1097, %v1098
    %v1100 = vmul.f32 %v907, %v1096
    %v1101 = vmul.f32 %v909, %v1099
    %v1102 = vsub.f32 %v1100, %v1101
    %v1103 = vadd.f32 %v1102, %v919
    %v1104 = vmul.f32 %v910, %v1096
    %v1105 = vmul.f32 %v911, %v1099
    %v1106 = vadd.f32 %v1104, %v1105
    %v1107 = vadd.f32 %v1106, %v924
    %v1108 = vsub.f32 %v1103, %v687
    %v1109 = vsub.f32 %v1107, %v694
    %v1110 = vmul.f32 %v1108, %v1108
    %v1111 = vmul.f32 %v1109, %v1109
    %v1112 = vadd.f32 %v1110, %v1111
    %1113 = vmin.xlane.f32.xlu0 %v1112
    %v1114 = vpop.xlane.xlu0 %1113
    %v1115 = vmin.f32 %v1092, %v1112
    %v1116 = vmax.f32 %v1093, %v1114
    %v1117 = vmul.f32 %v801, -0.14231484
    %v1118 = vmul.f32 %v905, -0.98982143
    %v1119 = vsub.f32 %v1117, %v1118
    %v1120 = vmul.f32 %v905, -0.14231484
    %v1121 = vmul.f32 %v801, -0.98982143
    %v1122 = vadd.f32 %v1120, %v1121
    %v1123 = vmul.f32 %v907, %v1119
    %v1124 = vmul.f32 %v909, %v1122
    %v1125 = vsub.f32 %v1123, %v1124
    %v1126 = vadd.f32 %v1125, %v919
    %v1127 = vmul.f32 %v910, %v1119
    %v1128 = vmul.f32 %v911, %v1122
    %v1129 = vadd.f32 %v1127, %v1128
    %v1130 = vadd.f32 %v1129, %v924
    %v1131 = vsub.f32 %v1126, %v687
    %v1132 = vsub.f32 %v1130, %v694
    %v1133 = vmul.f32 %v1131, %v1131
    %v1134 = vmul.f32 %v1132, %v1132
    %v1135 = vadd.f32 %v1133, %v1134
    %1136 = vmin.xlane.f32.xlu0 %v1135
    %v1137 = vpop.xlane.xlu0 %1136
    %v1138 = vmin.f32 %v1115, %v1135
    %v1139 = vmax.f32 %v1116, %v1137
    %v1140 = vmul.f32 %v801, 0.3568862
    %v1141 = vmul.f32 %v905, -0.93414783
    %v1142 = vsub.f32 %v1140, %v1141
    %v1143 = vmul.f32 %v905, 0.3568862
    %v1144 = vmul.f32 %v801, -0.93414783
    %v1145 = vadd.f32 %v1143, %v1144
    %v1146 = vmul.f32 %v907, %v1142
    %v1147 = vmul.f32 %v909, %v1145
    %v1148 = vsub.f32 %v1146, %v1147
    %v1149 = vadd.f32 %v1148, %v919
    %v1150 = vmul.f32 %v910, %v1142
    %v1151 = vmul.f32 %v911, %v1145
    %v1152 = vadd.f32 %v1150, %v1151
    %v1153 = vadd.f32 %v1152, %v924
    %v1154 = vsub.f32 %v1149, %v687
    %v1155 = vsub.f32 %v1153, %v694
    %v1156 = vmul.f32 %v1154, %v1154
    %v1157 = vmul.f32 %v1155, %v1155
    %v1158 = vadd.f32 %v1156, %v1157
    %1159 = vmin.xlane.f32.xlu0 %v1158
    %v1160 = vpop.xlane.xlu0 %1159
    %v1161 = vmin.f32 %v1138, %v1158
    %v1162 = vmax.f32 %v1139, %v1160
    %v1163 = vmul.f32 %v801, 0.76604444
    %v1164 = vmul.f32 %v905, -0.64278764
    %v1165 = vsub.f32 %v1163, %v1164
    %v1166 = vmul.f32 %v905, 0.76604444
    %v1167 = vmul.f32 %v801, -0.64278764
    %v1168 = vadd.f32 %v1166, %v1167
    %v1169 = vmul.f32 %v907, %v1165
    %v1170 = vmul.f32 %v909, %v1168
    %v1171 = vsub.f32 %v1169, %v1170
    %v1172 = vadd.f32 %v1171, %v919
    %v1173 = vmul.f32 %v910, %v1165
    %v1174 = vmul.f32 %v911, %v1168
    %v1175 = vadd.f32 %v1173, %v1174
    %v1176 = vadd.f32 %v1175, %v924
    %v1177 = vsub.f32 %v1172, %v687
    %v1178 = vsub.f32 %v1176, %v694
    %v1179 = vmul.f32 %v1177, %v1177
    %v1180 = vmul.f32 %v1178, %v1178
    %v1181 = vadd.f32 %v1179, %v1180
    %1182 = vmin.xlane.f32.xlu0 %v1181
    %v1183 = vpop.xlane.xlu0 %1182
    %v1184 = vmin.f32 %v1161, %v1181
    %v1185 = vmax.f32 %v1162, %v1183
    %v1186 = vmul.f32 %v801, 0.90292656
    %v1187 = vmul.f32 %v905, -0.4297949
    %v1188 = vsub.f32 %v1186, %v1187
    %v1189 = vmul.f32 %v905, 0.90292656
    %v1190 = vmul.f32 %v801, -0.4297949
    %v1191 = vadd.f32 %v1189, %v1190
    %v1192 = vmul.f32 %v907, %v1188
    %v1193 = vmul.f32 %v909, %v1191
    %v1194 = vsub.f32 %v1192, %v1193
    %v1195 = vadd.f32 %v1194, %v919
    %v1196 = vmul.f32 %v910, %v1188
    %v1197 = vmul.f32 %v911, %v1191
    %v1198 = vadd.f32 %v1196, %v1197
    %v1199 = vadd.f32 %v1198, %v924
    %v1200 = vsub.f32 %v1195, %v687
    %v1201 = vsub.f32 %v1199, %v694
    %v1202 = vmul.f32 %v1200, %v1200
    %v1203 = vmul.f32 %v1201, %v1201
    %v1204 = vadd.f32 %v1202, %v1203
    %1205 = vmin.xlane.f32.xlu0 %v1204
    %v1206 = vpop.xlane.xlu0 %1205
    %v1207 = vmin.f32 %v1184, %v1204
    %v1208 = vmax.f32 %v1185, %v1206
    %v1209 = vrot.slane %v1208, 4
    %v1210 = vmax.f32 %v1208, %v1209
    %v1211 = vrot.slane %v1210, 2
    %v1212 = vmax.f32 %v1210, %v1211
    %v1213 = vrot.slane %v1212, 1
    %v1214 = vmax.f32 %v1212, %v1213
    %v1215 = vrot.slane %v1207, 4
    %v1216 = vmin.f32 %v1207, %v1215
    %v1217 = vrot.slane %v1216, 2
    %v1218 = vmin.f32 %v1216, %v1217
    %v1219 = vrot.slane %v1218, 1
    %v1220 = vmin.f32 %v1218, %v1219
    %1221 = vmax.xlane.f32.xlu0 %v1220
    %v1222 = vpop.xlane.xlu0 %1221
    %v1223 = vmax.f32 %v1214, %v1222
    %v1224 = vrsqrt.pop %v1223
    %v1225 = vmul.f32 %v1223, %v1224
    %vm1226 = vcmp.eq.f32.partialorder %v1223, inf
    %v1227 = vsel %vm1226, %v1223, %v1225
    %vm1228 = vcmp.eq.f32.partialorder %v1223, 0.0
    %v1229 = vand.u32 %v1223, 2147483648
    %v1230 = vsel %vm1228, %v1229, %v1227
    %vm1231 = vcmask 0
    %1232 = vst.msk [vmem:[#allocation7] sm:$0x1] %vm1231, %v1230
    // Predicated region
    $region18: #{tpu_custom_call.1} parent=1 // pred_check
      _
    $region19: #{tpu_custom_call.1} parent=1 // pred_check_branch
      %1234 = sbr.rel (0) target = $region21
    $region20: #{tpu_custom_call.1} parent=1 // pred_region
      %s1236 = ssub.s32 16, 16
      %1237 = vsyncadd [#allocation3], %s1236
      %s1239 = sshll.u32 [#allocation7], 4
      %s1240 = int_to_ptr.vmem [resolvable:$true] %s1239
      %1242 = dma.vmem_to_hbm [thread:$0]  %s1240, 16, %s2, [#allocation3]
    $region21: #{tpu_custom_call.1} parent=1 // pred_fallthru
      _
    // Predicated region
    $region22: #{tpu_custom_call.1} parent=1 // pred_check
      _
    $region23: #{tpu_custom_call.1} parent=1 // pred_check_branch
      %1244 = sbr.rel (0) target = $region25
    $region24: #{tpu_custom_call.1} parent=1 // pred_region
      %1245 = dma.done [#allocation3], 16
    $region25: #{tpu_custom_call.1} parent=1 // pred_fallthru
      _
    %1246 = vsyncpa [#allocation3], 1
    %1247 = vsyncpa [#allocation4], 1
    %1248 = vsyncpa [#allocation5], 1

</llo_original>
